<compile_context>
chip_gen: v5e
topology: v5e:2x2
jax: 0.10.0
libtpu: 0.0.40
codegen_flags: <defaults>
</compile_context>

<pallas_src>
import jax
import jax.numpy as jnp
import numpy as np
from jax import lax
from jax.experimental import pallas as pl
from jax.experimental.pallas import tpu as pltpu
from jax.scipy.linalg import block_diag

# -----------------------------------------------------------------------------
# Small, synthetic config (stands in for g_conf + params of CoILICRA).
# -----------------------------------------------------------------------------
SENSORS = {'rgb': [3, 16, 16]}          # C, H, W
NUMBER_FRAMES_FUSION = 1
INPUTS = ['speed_module']               # one measurement input
TARGETS = ['steer', 'throttle', 'brake']

PARAMS = {
    'perception': {
        'conv': {'channels': [8, 16], 'kernels': [5, 3], 'strides': [2, 2],
                 'dropouts': [0.0, 0.0]},
        'fc': {'neurons': [32], 'dropouts': [0.0]},
    },
    'measurements': {'fc': {'neurons': [16, 16], 'dropouts': [0.0, 0.0]}},
    'join': {'fc': {'neurons': [32], 'dropouts': [0.0]}},
    'speed_branch': {'fc': {'neurons': [16, 16], 'dropouts': [0.0, 0.0]}},
    'branches': {'number_of_branches': 4,
                 'fc': {'neurons': [16, 16], 'dropouts': [0.0, 0.0]}},
}
BN_EPS = 1e-5
BATCH = 2

B_TILE = 8            # one f32 sublane tile worth of batch rows per grid step
HEAD_PAD = 128        # lane-dense head output width (sliced back to 13)


# -----------------------------------------------------------------------------
# Single fused Pallas kernel.  Specialized (asserts at build time) to: 2 conv
# layers, 1 perception FC, 2 measurement FCs, 1 join FC, 3-layer heads
# (4 control branches + speed branch).  Weights live in VMEM for all grid
# steps; only batch tiles of activations stream per step.
# -----------------------------------------------------------------------------
def _make_kernel(geom1, geom2):
    k1, s1, cw1 = geom1['k'], geom1['stride'], geom1['cw_in']
    k2, s2, cw2, oh2 = geom2['k'], geom2['stride'], geom2['cw_in'], geom2['oh']
    rw1, rw2 = geom1['row_out'], geom2['row_out']
    # conv1 output rows actually consumed by conv2 (others never reach the
    # module outputs, so they are legally skipped).
    needed_rows = sorted({r2 * s2 + dr for r2 in range(oh2) for dr in range(k2)})

    def kernel(img_ref, a_ref,
               wc1, bc1, wc2, bc2,        # per-output-row conv+BN folds
               wp, bp,                    # perception FC (rows permuted)
               wm1, bm1, wm2, bm2,        # measurements FC (layer 0 has K==1)
               wj_x, wj_m, bj,            # join FC, split over the concat
               wh1_j, wh1_x, bh1,         # heads layer 1 (branches<-j, speed<-x)
               wh2, bh2, wh3, bh3,        # heads layers 2/3 (block diag, padded)
               out_ref):
        f32, bf16 = jnp.float32, jnp.bfloat16

        def dense(x, w_ref, b_ref, relu=True):
            y = jnp.dot(x.astype(bf16), w_ref[...],
                        preferred_element_type=f32) + b_ref[...]
            return jnp.maximum(y, 0.0) if relu else y

        # ---- conv1 + BN + ReLU: one small matmul per needed output row ------
        wc1v = wc1[...]                              # (k1*cw1, rw1) bf16
        c1 = {}
        for r in needed_rows:                        # static python unroll
            start = r * s1 * cw1
            slab = img_ref[:, start:start + k1 * cw1].astype(bf16)
            c1[r] = jnp.maximum(
                jnp.dot(slab, wc1v, preferred_element_type=f32) + bc1[...], 0.0)

        # ---- conv2 + BN + ReLU, chained into the perception FC --------------
        # conv2 row = sum over its k2 conv1 rows of sub-block matmuls;
        # perception FC accumulates over conv2 rows (no concat / reshape).
        x_acc = bp[...]
        for r2 in range(oh2):
            acc = bc2[...]
            for dr in range(k2):
                acc = acc + jnp.dot(c1[r2 * s2 + dr].astype(bf16),
                                    wc2[dr * rw1:(dr + 1) * rw1, :],
                                    preferred_element_type=f32)
            y2r = jnp.maximum(acc, 0.0)                       # (Bt, rw2)
            x_acc = x_acc + jnp.dot(y2r.astype(bf16),
                                    wp[r2 * rw2:(r2 + 1) * rw2, :],
                                    preferred_element_type=f32)
        x = jnp.maximum(x_acc, 0.0)                           # (Bt, 32)

        # ---- measurements: 1 -> 16 -> 16 (ReLU); K==1 layer is a broadcast --
        m = jnp.maximum(a_ref[...] * wm1[...] + bm1[...], 0.0)
        m = dense(m, wm2, bm2)                                # (Bt, 16)

        # ---- join: FC over concat([x, m]) expressed as a split matmul -------
        j = jnp.maximum(jnp.dot(x.astype(bf16), wj_x[...], preferred_element_type=f32)
                        + jnp.dot(m.astype(bf16), wj_m[...], preferred_element_type=f32)
                        + bj[...], 0.0)                       # (Bt, 32)

        # ---- heads: 4 control branches (input j) + speed branch (input x) ---
        h = jnp.maximum(jnp.dot(j.astype(bf16), wh1_j[...], preferred_element_type=f32)
                        + jnp.dot(x.astype(bf16), wh1_x[...], preferred_element_type=f32)
                        + bh1[...], 0.0)                      # (Bt, 80)
        h = dense(h, wh2, bh2)                                # (Bt, 80)
        out_ref[...] = dense(h, wh3, bh3, relu=False)         # (Bt, 128) lane dense

    return kernel


# -----------------------------------------------------------------------------
# Deterministic parameter initialization (xavier_uniform weights, bias = 0.1),
# mirroring the PyTorch module's __init__.  Stored "raw" (PyTorch layout),
# then folded/packed once for the fused kernel.
# -----------------------------------------------------------------------------
def _xavier_uniform(key, shape, fan_in, fan_out):
    limit = (6.0 / (fan_in + fan_out)) ** 0.5
    return jax.random.uniform(key, shape, jnp.float32, -limit, limit)


def build_raw_params(key):
    keys = iter(jax.random.split(key, 64))
    c0 = sum(s[0] for s in SENSORS.values()) * NUMBER_FRAMES_FUSION
    h, w = next(iter(SENSORS.values()))[1:]

    conv_cfg = PARAMS['perception']['conv']
    channels = [c0] + conv_cfg['channels']
    conv = []
    for i in range(len(channels) - 1):
        k = conv_cfg['kernels'][i]
        s = conv_cfg['strides'][i]
        cin, cout = channels[i], channels[i + 1]
        wgt = _xavier_uniform(next(keys), (cout, cin, k, k),
                              cin * k * k, cout * k * k)        # PyTorch OIHW
        conv.append((wgt, jnp.full((cout,), 0.1, jnp.float32), s))
        h = (h - k) // s + 1
        w = (w - k) // s + 1
    conv_out_dim = channels[-1] * h * w      # == Conv.get_conv_output(...)

    def fc(neurons):
        layers = []
        for i in range(len(neurons) - 1):
            fin, fout = neurons[i], neurons[i + 1]
            layers.append((_xavier_uniform(next(keys), (fin, fout), fin, fout),
                           jnp.full((fout,), 0.1, jnp.float32)))
        return layers

    perception_fc = fc([conv_out_dim] + PARAMS['perception']['fc']['neurons'])
    n_out = PARAMS['perception']['fc']['neurons'][-1]
    measurements_fc = fc([len(INPUTS)] + PARAMS['measurements']['fc']['neurons'])
    join_fc = fc([PARAMS['measurements']['fc']['neurons'][-1] + n_out]
                 + PARAMS['join']['fc']['neurons'])
    speed = fc([PARAMS['join']['fc']['neurons'][-1]]
               + PARAMS['speed_branch']['fc']['neurons'] + [1])
    branches = [fc([PARAMS['join']['fc']['neurons'][-1]]
                   + PARAMS['branches']['fc']['neurons'] + [len(TARGETS)])
                for _ in range(PARAMS['branches']['number_of_branches'])]
    return dict(conv=conv, perception_fc=perception_fc,
                measurements_fc=measurements_fc, join_fc=join_fc,
                speed=speed, branches=branches)


def _conv_row_dense(w_oihw, b, stride, in_chw, bn_scale):
    """Fold Conv2d(valid, stride) + eval-BN(default stats) into a SMALL shared
    per-output-row matrix acting on a (kh, C, W)-flattened input row-slab.
    The per-sample activation layout is flattened (H, C, W); the output row is
    flattened (C_out, OW), so stacking rows reproduces the same (H, C, W)
    layout for the next layer."""
    cout, cin, kh, kw = w_oihw.shape
    c, h, w = in_chw
    assert cin == c and kh == kw
    k = kh
    oh = (h - k) // stride + 1
    ow = (w - k) // stride + 1
    n_slab = k * c * w
    basis = jnp.eye(n_slab, dtype=jnp.float32).reshape(n_slab, k, c, w)
    basis_nchw = jnp.transpose(basis, (0, 2, 1, 3))          # (n_slab, C, k, W)
    y = lax.conv_general_dilated(
        basis_nchw, w_oihw, window_strides=(1, stride), padding='VALID',
        dimension_numbers=('NCHW', 'OIHW', 'NCHW'),
        precision=lax.Precision.HIGHEST)                     # (n_slab, cout, 1, ow)
    mat = y.reshape(n_slab, cout * ow) * bn_scale
    bias = (jnp.repeat(b, ow) * bn_scale).reshape(1, cout * ow)
    geom = dict(k=k, stride=stride, cw_in=c * w, oh=oh,
                row_out=cout * ow, out_chw=(cout, oh, ow))
    return mat, bias, geom


def build_fused_params(raw, in_chw):
    """One-time folding/packing: BN fold, conv -> per-row dense, perception-FC
    row permutation, (1, N) bias reshapes, head batching, bf16 weight casts,
    lane-dense head padding."""
    bn_scale = (1.0 + BN_EPS) ** -0.5       # eval-mode BN with default stats
    bf16 = jnp.bfloat16

    assert len(raw['conv']) == 2, "fused kernel is specialized to 2 conv layers"
    (w1, b1, s1), (w2, b2, s2) = raw['conv']
    wc1, bc1, geom1 = _conv_row_dense(w1, b1, s1, in_chw, bn_scale)
    wc2, bc2, geom2 = _conv_row_dense(w2, b2, s2, geom1['out_chw'], bn_scale)

    def row(v):
        return v.reshape(1, -1)

    # Perception FC: raw rows are in PyTorch NCHW flatten order; the kernel's
    # conv2 output is in (H, C, W) order -> permute the FC weight rows once.
    assert len(raw['perception_fc']) == 1
    wp, bp = raw['perception_fc'][0]
    c2_, oh2_, ow2_ = geom2['out_chw']
    perm = np.arange(c2_ * oh2_ * ow2_).reshape(c2_, oh2_, ow2_)
    perm = perm.transpose(1, 0, 2).reshape(-1)
    wp = wp[perm, :]
    bp = row(bp)
    x_dim = wp.shape[1]                      # perception output width (32)

    assert len(raw['measurements_fc']) == 2
    (wm1, bm1), (wm2, bm2) = raw['measurements_fc']
    assert wm1.shape[0] == 1                 # kernel uses a broadcast multiply
    wm1, bm1, bm2 = wm1.reshape(1, -1), row(bm1), row(bm2)

    assert len(raw['join_fc']) == 1
    wj, bj = raw['join_fc'][0]
    wj_x, wj_m, bj = wj[:x_dim, :], wj[x_dim:, :], row(bj)

    # Heads: 4 control branches (input j) + speed branch (input x), 3 layers.
    heads = list(raw['branches']) + [raw['speed']]
    assert all(len(hd) == 3 for hd in heads), "heads must be 3-layer FC stacks"
    j_dim = raw['branches'][0][0][0].shape[0]
    sp_in = raw['speed'][0][0].shape[0]
    br_w1 = jnp.concatenate([hd[0][0] for hd in raw['branches']], axis=1)
    sp_w1 = raw['speed'][0][0]
    wh1_j = jnp.concatenate(
        [br_w1, jnp.zeros((j_dim, sp_w1.shape[1]), jnp.float32)], axis=1)
    wh1_x = jnp.concatenate(
        [jnp.zeros((sp_in, br_w1.shape[1]), jnp.float32), sp_w1], axis=1)
    bh1 = jnp.concatenate([hd[0][1] for hd in heads]).reshape(1, -1)
    wh2 = block_diag(*[hd[1][0] for hd in heads])
    bh2 = jnp.concatenate([hd[1][1] for hd in heads]).reshape(1, -1)
    wh3 = block_diag(*[hd[2][0] for hd in heads])                 # (80, 13)
    bh3 = jnp.concatenate([hd[2][1] for hd in heads]).reshape(1, -1)
    head_out = int(wh3.shape[1])
    # lane-dense output: pad to 128 columns with ZERO weights and ZERO bias
    wh3 = jnp.pad(wh3, ((0, 0), (0, HEAD_PAD - head_out)))
    bh3 = jnp.pad(bh3, ((0, 0), (0, HEAD_PAD - head_out)))

    # bf16 for every matmul weight; biases and the K==1 measurement weight stay f32.
    weights = (wc1.astype(bf16), bc1, wc2.astype(bf16), bc2,
               wp.astype(bf16), bp,
               wm1, bm1, wm2.astype(bf16), bm2,
               wj_x.astype(bf16), wj_m.astype(bf16), bj,
               wh1_j.astype(bf16), wh1_x.astype(bf16), bh1,
               wh2.astype(bf16), bh2, wh3.astype(bf16), bh3)
    meta = dict(n_branches=len(raw['branches']), n_targets=len(TARGETS),
                head_out=head_out, head_out_pad=HEAD_PAD,
                geom1=geom1, geom2=geom2)
    return weights, meta


# -----------------------------------------------------------------------------
# Forward: one pallas_call with a batch grid (weights VMEM-resident across
# grid steps), then split the lane-dense head output on the host side.
# -----------------------------------------------------------------------------
def coil_icra_forward(weights, meta, image_nchw, a):
    """CoILICRA.forward -> [branch_0..3 (B, n_targets), speed (B, 1)]."""
    b = image_nchw.shape[0]
    b_pad = ((b + B_TILE - 1) // B_TILE) * B_TILE
    # per-sample (H, C, W) flatten so conv row-slabs are contiguous lane ranges
    img_hcw = jnp.transpose(image_nchw, (0, 2, 1, 3)).reshape(b, -1)
    a_p = a
    if b_pad != b:
        img_hcw = jnp.pad(img_hcw, ((0, b_pad - b), (0, 0)))
        a_p = jnp.pad(a_p, ((0, b_pad - b), (0, 0)))
    d_img = img_hcw.shape[1]
    n_tiles = b_pad // B_TILE

    kernel = _make_kernel(meta['geom1'], meta['geom2'])

    # cost hint: matmul MACs (conv weights re-used per output row) + DMA bytes
    g2 = meta['geom2']
    n_rows1 = (g2['oh'] - 1) * g2['stride'] + g2['k']
    reuse = {0: n_rows1, 2: g2['oh']}
    matmul_idx = (0, 2, 4, 8, 10, 11, 13, 14, 16, 18)
    per_sample_macs = sum(reuse.get(i, 1) * int(np.prod(weights[i].shape))
                          for i in matmul_idx)
    weight_bytes = sum(int(np.prod(w.shape)) * w.dtype.itemsize for w in weights)
    bytes_accessed = (weight_bytes + img_hcw.size * 4 + a_p.size * 4
                      + b_pad * meta['head_out_pad'] * 4)
    cost = pl.CostEstimate(flops=2 * b_pad * per_sample_macs,
                           transcendentals=0,
                           bytes_accessed=int(bytes_accessed))

    in_specs = ([pl.BlockSpec((B_TILE, d_img), lambda i: (i, 0)),
                 pl.BlockSpec((B_TILE, a_p.shape[1]), lambda i: (i, 0))]
                + [pl.BlockSpec(w.shape, lambda i: (0, 0)) for w in weights])

    out = pl.pallas_call(
        kernel,
        out_shape=jax.ShapeDtypeStruct((b_pad, meta['head_out_pad']), jnp.float32),
        grid=(n_tiles,),
        in_specs=in_specs,
        out_specs=pl.BlockSpec((B_TILE, meta['head_out_pad']), lambda i: (i, 0)),
        compiler_params=pltpu.CompilerParams(dimension_semantics=("parallel",)),
        cost_estimate=cost,
    )(img_hcw, a_p, *weights)

    nt, nb = meta['n_targets'], meta['n_branches']
    out = out[:b]
    branch_outputs = [out[:, i * nt:(i + 1) * nt] for i in range(nb)]
    speed_branch_output = out[:, nb * nt:meta['head_out']]
    # TODO(synk): 'seg' sensor / representation-loss / intention_rep config
    # branches and the host-side forward_branch/extract_branch indexing are not
    # exercised by this config and are omitted.
    return branch_outputs + [speed_branch_output]


# -----------------------------------------------------------------------------
# Pure-JAX f32 reference of the original per-layer graph (correctness guard).
# -----------------------------------------------------------------------------
def reference_forward(raw, image_nchw, a):
    hp = lax.Precision.HIGHEST
    bn_scale = (1.0 + BN_EPS) ** -0.5
    x = image_nchw
    for (w_oihw, b, s) in raw['conv']:
        x = lax.conv_general_dilated(x, w_oihw, (s, s), 'VALID',
                                     dimension_numbers=('NCHW', 'OIHW', 'NCHW'),
                                     precision=hp)
        x = (x + b.reshape(1, -1, 1, 1)) * bn_scale
        x = jnp.maximum(x, 0.0)
    x = x.reshape(x.shape[0], -1)               # PyTorch NCHW flatten

    def fc(v, layers, end_layer):
        for i, (w, b) in enumerate(layers):
            v = jnp.dot(v, w, precision=hp) + b
            if not (end_layer and i == len(layers) - 1):
                v = jnp.maximum(v, 0.0)
        return v

    x = fc(x, raw['perception_fc'], False)
    m = fc(a, raw['measurements_fc'], False)
    j = fc(jnp.concatenate([x, m], axis=1), raw['join_fc'], False)
    outs = [fc(j, br, True) for br in raw['branches']]
    outs.append(fc(x, raw['speed'], True))
    return outs


if __name__ == "__main__":
    key = jax.random.PRNGKey(0)
    k_params, k_img, k_meas = jax.random.split(key, 3)

    raw = build_raw_params(k_params)
    c0 = sum(s[0] for s in SENSORS.values()) * NUMBER_FRAMES_FUSION
    h0, w0 = next(iter(SENSORS.values()))[1:]
    weights, meta = build_fused_params(raw, (c0, h0, w0))

    image = jax.random.normal(k_img, (BATCH, c0, h0, w0), jnp.float32)   # NCHW
    a = jax.random.normal(k_meas, (BATCH, len(INPUTS)), jnp.float32)     # speed

    fwd = jax.jit(lambda w, img, aa: coil_icra_forward(w, meta, img, aa))
    outputs = jax.block_until_ready(fwd(weights, image, a))

    # sanity: 4 control branches of shape (B, len(TARGETS)) + speed of (B, 1)
    assert len(outputs) == PARAMS['branches']['number_of_branches'] + 1
    for o in outputs[:-1]:
        assert o.shape == (BATCH, len(TARGETS)), o.shape
    assert outputs[-1].shape == (BATCH, 1), outputs[-1].shape
    assert all(bool(jnp.all(jnp.isfinite(o))) for o in outputs)

    # numerical check against the un-fused pure-JAX f32 reference
    ref = reference_forward(raw, image, a)
    for o, r in zip(outputs, ref):
        max_diff = float(jnp.max(jnp.abs(o - r)))
        assert bool(jnp.allclose(o, r, rtol=5e-2, atol=5e-2)), max_diff

    print("KERNEL_OK")
</pallas_src>

<mosaic_0001>
module attributes {stable_mosaic.version = 11 : i64} {
  func.func @kernel(%arg0: i32, %arg1: memref<8x768xf32, #tpu.memory_space<vmem>>, %arg2: memref<8x1xf32, #tpu.memory_space<vmem>>, %arg3: memref<240x48xbf16, #tpu.memory_space<vmem>>, %arg4: memref<1x48xf32, #tpu.memory_space<vmem>>, %arg5: memref<144x32xbf16, #tpu.memory_space<vmem>>, %arg6: memref<1x32xf32, #tpu.memory_space<vmem>>, %arg7: memref<64x32xbf16, #tpu.memory_space<vmem>>, %arg8: memref<1x32xf32, #tpu.memory_space<vmem>>, %arg9: memref<1x16xf32, #tpu.memory_space<vmem>>, %arg10: memref<1x16xf32, #tpu.memory_space<vmem>>, %arg11: memref<16x16xbf16, #tpu.memory_space<vmem>>, %arg12: memref<1x16xf32, #tpu.memory_space<vmem>>, %arg13: memref<32x32xbf16, #tpu.memory_space<vmem>>, %arg14: memref<16x32xbf16, #tpu.memory_space<vmem>>, %arg15: memref<1x32xf32, #tpu.memory_space<vmem>>, %arg16: memref<32x80xbf16, #tpu.memory_space<vmem>>, %arg17: memref<32x80xbf16, #tpu.memory_space<vmem>>, %arg18: memref<1x80xf32, #tpu.memory_space<vmem>>, %arg19: memref<80x80xbf16, #tpu.memory_space<vmem>>, %arg20: memref<1x80xf32, #tpu.memory_space<vmem>>, %arg21: memref<80x128xbf16, #tpu.memory_space<vmem>>, %arg22: memref<1x128xf32, #tpu.memory_space<vmem>>, %arg23: memref<8x128xf32, #tpu.memory_space<vmem>>) attributes {dimension_semantics = [#tpu.dimension_semantics<parallel>], iteration_bounds = array<i64: 1>, scalar_prefetch = 0 : i64, scratch_operands = 0 : i64, tpu.core_type = #tpu.core_type<tc>, window_params = [{transform_indices = @transform_0, window_bounds = array<i64: 8, 768>}, {transform_indices = @transform_1, window_bounds = array<i64: 8, 1>}, {pipeline_mode = #tpu.pipeline_mode<synchronous>, transform_indices = @transform_2, window_bounds = array<i64: 240, 48>}, {pipeline_mode = #tpu.pipeline_mode<synchronous>, transform_indices = @transform_3, window_bounds = array<i64: 1, 48>}, {pipeline_mode = #tpu.pipeline_mode<synchronous>, transform_indices = @transform_4, window_bounds = array<i64: 144, 32>}, {pipeline_mode = #tpu.pipeline_mode<synchronous>, transform_indices = @transform_5, window_bounds = array<i64: 1, 32>}, {pipeline_mode = #tpu.pipeline_mode<synchronous>, transform_indices = @transform_6, window_bounds = array<i64: 64, 32>}, {pipeline_mode = #tpu.pipeline_mode<synchronous>, transform_indices = @transform_7, window_bounds = array<i64: 1, 32>}, {pipeline_mode = #tpu.pipeline_mode<synchronous>, transform_indices = @transform_8, window_bounds = array<i64: 1, 16>}, {pipeline_mode = #tpu.pipeline_mode<synchronous>, transform_indices = @transform_9, window_bounds = array<i64: 1, 16>}, {pipeline_mode = #tpu.pipeline_mode<synchronous>, transform_indices = @transform_10, window_bounds = array<i64: 16, 16>}, {pipeline_mode = #tpu.pipeline_mode<synchronous>, transform_indices = @transform_11, window_bounds = array<i64: 1, 16>}, {pipeline_mode = #tpu.pipeline_mode<synchronous>, transform_indices = @transform_12, window_bounds = array<i64: 32, 32>}, {pipeline_mode = #tpu.pipeline_mode<synchronous>, transform_indices = @transform_13, window_bounds = array<i64: 16, 32>}, {pipeline_mode = #tpu.pipeline_mode<synchronous>, transform_indices = @transform_14, window_bounds = array<i64: 1, 32>}, {pipeline_mode = #tpu.pipeline_mode<synchronous>, transform_indices = @transform_15, window_bounds = array<i64: 32, 80>}, {pipeline_mode = #tpu.pipeline_mode<synchronous>, transform_indices = @transform_16, window_bounds = array<i64: 32, 80>}, {pipeline_mode = #tpu.pipeline_mode<synchronous>, transform_indices = @transform_17, window_bounds = array<i64: 1, 80>}, {pipeline_mode = #tpu.pipeline_mode<synchronous>, transform_indices = @transform_18, window_bounds = array<i64: 80, 80>}, {pipeline_mode = #tpu.pipeline_mode<synchronous>, transform_indices = @transform_19, window_bounds = array<i64: 1, 80>}, {pipeline_mode = #tpu.pipeline_mode<synchronous>, transform_indices = @transform_20, window_bounds = array<i64: 80, 128>}, {pipeline_mode = #tpu.pipeline_mode<synchronous>, transform_indices = @transform_21, window_bounds = array<i64: 1, 128>}, {transform_indices = @transform_22, window_bounds = array<i64: 8, 128>}]} {
    %c0 = arith.constant 0 : index
    %c0_0 = arith.constant 0 : index
    %0 = vector.load %arg3[%c0, %c0_0] : memref<240x48xbf16, #tpu.memory_space<vmem>>, vector<240x48xbf16>
    %c0_1 = arith.constant 0 : index
    %c0_2 = arith.constant 0 : index
    %1 = vector.load %arg1[%c0_1, %c0_2] : memref<8x768xf32, #tpu.memory_space<vmem>>, vector<8x240xf32>
    %2 = arith.truncf %1 : vector<8x240xf32> to vector<8x240xbf16>
    %cst = arith.constant dense<0.000000e+00> : vector<8x48xf32>
    %3 = tpu.matmul %2, %0, %cst {dimension_numbers = #tpu.dot_dimension_numbers<[1], [0], [0], [1], [0, 0, 1, 1], [], []>} : vector<8x240xbf16>, vector<240x48xbf16>, vector<8x48xf32> -> vector<8x48xf32>
    %c0_3 = arith.constant 0 : index
    %c0_4 = arith.constant 0 : index
    %4 = vector.load %arg4[%c0_3, %c0_4] : memref<1x48xf32, #tpu.memory_space<vmem>>, vector<1x48xf32>
    %5 = vector.broadcast %4 : vector<1x48xf32> to vector<8x48xf32>
    %6 = arith.addf %3, %5 : vector<8x48xf32>
    %cst_5 = arith.constant 0.000000e+00 : f32
    %7 = vector.broadcast %cst_5 : f32 to vector<8x48xf32>
    %8 = arith.maximumf %6, %7 : vector<8x48xf32>
    %c0_6 = arith.constant 0 : index
    %c96 = arith.constant 96 : index
    %9 = vector.load %arg1[%c0_6, %c96] : memref<8x768xf32, #tpu.memory_space<vmem>>, vector<8x240xf32>
    %10 = arith.truncf %9 : vector<8x240xf32> to vector<8x240xbf16>
    %cst_7 = arith.constant dense<0.000000e+00> : vector<8x48xf32>
    %11 = tpu.matmul %10, %0, %cst_7 {dimension_numbers = #tpu.dot_dimension_numbers<[1], [0], [0], [1], [0, 0, 1, 1], [], []>} : vector<8x240xbf16>, vector<240x48xbf16>, vector<8x48xf32> -> vector<8x48xf32>
    %c0_8 = arith.constant 0 : index
    %c0_9 = arith.constant 0 : index
    %12 = vector.load %arg4[%c0_8, %c0_9] : memref<1x48xf32, #tpu.memory_space<vmem>>, vector<1x48xf32>
    %13 = vector.broadcast %12 : vector<1x48xf32> to vector<8x48xf32>
    %14 = arith.addf %11, %13 : vector<8x48xf32>
    %cst_10 = arith.constant 0.000000e+00 : f32
    %15 = vector.broadcast %cst_10 : f32 to vector<8x48xf32>
    %16 = arith.maximumf %14, %15 : vector<8x48xf32>
    %c0_11 = arith.constant 0 : index
    %c192 = arith.constant 192 : index
    %17 = vector.load %arg1[%c0_11, %c192] : memref<8x768xf32, #tpu.memory_space<vmem>>, vector<8x240xf32>
    %18 = arith.truncf %17 : vector<8x240xf32> to vector<8x240xbf16>
    %cst_12 = arith.constant dense<0.000000e+00> : vector<8x48xf32>
    %19 = tpu.matmul %18, %0, %cst_12 {dimension_numbers = #tpu.dot_dimension_numbers<[1], [0], [0], [1], [0, 0, 1, 1], [], []>} : vector<8x240xbf16>, vector<240x48xbf16>, vector<8x48xf32> -> vector<8x48xf32>
    %c0_13 = arith.constant 0 : index
    %c0_14 = arith.constant 0 : index
    %20 = vector.load %arg4[%c0_13, %c0_14] : memref<1x48xf32, #tpu.memory_space<vmem>>, vector<1x48xf32>
    %21 = vector.broadcast %20 : vector<1x48xf32> to vector<8x48xf32>
    %22 = arith.addf %19, %21 : vector<8x48xf32>
    %cst_15 = arith.constant 0.000000e+00 : f32
    %23 = vector.broadcast %cst_15 : f32 to vector<8x48xf32>
    %24 = arith.maximumf %22, %23 : vector<8x48xf32>
    %c0_16 = arith.constant 0 : index
    %c288 = arith.constant 288 : index
    %25 = vector.load %arg1[%c0_16, %c288] : memref<8x768xf32, #tpu.memory_space<vmem>>, vector<8x240xf32>
    %26 = arith.truncf %25 : vector<8x240xf32> to vector<8x240xbf16>
    %cst_17 = arith.constant dense<0.000000e+00> : vector<8x48xf32>
    %27 = tpu.matmul %26, %0, %cst_17 {dimension_numbers = #tpu.dot_dimension_numbers<[1], [0], [0], [1], [0, 0, 1, 1], [], []>} : vector<8x240xbf16>, vector<240x48xbf16>, vector<8x48xf32> -> vector<8x48xf32>
    %c0_18 = arith.constant 0 : index
    %c0_19 = arith.constant 0 : index
    %28 = vector.load %arg4[%c0_18, %c0_19] : memref<1x48xf32, #tpu.memory_space<vmem>>, vector<1x48xf32>
    %29 = vector.broadcast %28 : vector<1x48xf32> to vector<8x48xf32>
    %30 = arith.addf %27, %29 : vector<8x48xf32>
    %cst_20 = arith.constant 0.000000e+00 : f32
    %31 = vector.broadcast %cst_20 : f32 to vector<8x48xf32>
    %32 = arith.maximumf %30, %31 : vector<8x48xf32>
    %c0_21 = arith.constant 0 : index
    %c384 = arith.constant 384 : index
    %33 = vector.load %arg1[%c0_21, %c384] : memref<8x768xf32, #tpu.memory_space<vmem>>, vector<8x240xf32>
    %34 = arith.truncf %33 : vector<8x240xf32> to vector<8x240xbf16>
    %cst_22 = arith.constant dense<0.000000e+00> : vector<8x48xf32>
    %35 = tpu.matmul %34, %0, %cst_22 {dimension_numbers = #tpu.dot_dimension_numbers<[1], [0], [0], [1], [0, 0, 1, 1], [], []>} : vector<8x240xbf16>, vector<240x48xbf16>, vector<8x48xf32> -> vector<8x48xf32>
    %c0_23 = arith.constant 0 : index
    %c0_24 = arith.constant 0 : index
    %36 = vector.load %arg4[%c0_23, %c0_24] : memref<1x48xf32, #tpu.memory_space<vmem>>, vector<1x48xf32>
    %37 = vector.broadcast %36 : vector<1x48xf32> to vector<8x48xf32>
    %38 = arith.addf %35, %37 : vector<8x48xf32>
    %cst_25 = arith.constant 0.000000e+00 : f32
    %39 = vector.broadcast %cst_25 : f32 to vector<8x48xf32>
    %40 = arith.maximumf %38, %39 : vector<8x48xf32>
    %c0_26 = arith.constant 0 : index
    %c0_27 = arith.constant 0 : index
    %41 = vector.load %arg8[%c0_26, %c0_27] : memref<1x32xf32, #tpu.memory_space<vmem>>, vector<1x32xf32>
    %c0_28 = arith.constant 0 : index
    %c0_29 = arith.constant 0 : index
    %42 = vector.load %arg6[%c0_28, %c0_29] : memref<1x32xf32, #tpu.memory_space<vmem>>, vector<1x32xf32>
    %43 = arith.truncf %8 : vector<8x48xf32> to vector<8x48xbf16>
    %c0_30 = arith.constant 0 : index
    %c0_31 = arith.constant 0 : index
    %44 = vector.load %arg5[%c0_30, %c0_31] : memref<144x32xbf16, #tpu.memory_space<vmem>>, vector<48x32xbf16>
    %cst_32 = arith.constant dense<0.000000e+00> : vector<8x32xf32>
    %45 = tpu.matmul %43, %44, %cst_32 {dimension_numbers = #tpu.dot_dimension_numbers<[1], [0], [0], [1], [0, 0, 1, 1], [], []>} : vector<8x48xbf16>, vector<48x32xbf16>, vector<8x32xf32> -> vector<8x32xf32>
    %46 = vector.broadcast %42 : vector<1x32xf32> to vector<8x32xf32>
    %47 = arith.addf %46, %45 : vector<8x32xf32>
    %48 = arith.truncf %16 : vector<8x48xf32> to vector<8x48xbf16>
    %c48 = arith.constant 48 : index
    %c0_33 = arith.constant 0 : index
    %49 = vector.load %arg5[%c48, %c0_33] : memref<144x32xbf16, #tpu.memory_space<vmem>>, vector<48x32xbf16>
    %cst_34 = arith.constant dense<0.000000e+00> : vector<8x32xf32>
    %50 = tpu.matmul %48, %49, %cst_34 {dimension_numbers = #tpu.dot_dimension_numbers<[1], [0], [0], [1], [0, 0, 1, 1], [], []>} : vector<8x48xbf16>, vector<48x32xbf16>, vector<8x32xf32> -> vector<8x32xf32>
    %51 = arith.addf %47, %50 : vector<8x32xf32>
    %52 = arith.truncf %24 : vector<8x48xf32> to vector<8x48xbf16>
    %c96_35 = arith.constant 96 : index
    %c0_36 = arith.constant 0 : index
    %53 = vector.load %arg5[%c96_35, %c0_36] : memref<144x32xbf16, #tpu.memory_space<vmem>>, vector<48x32xbf16>
    %cst_37 = arith.constant dense<0.000000e+00> : vector<8x32xf32>
    %54 = tpu.matmul %52, %53, %cst_37 {dimension_numbers = #tpu.dot_dimension_numbers<[1], [0], [0], [1], [0, 0, 1, 1], [], []>} : vector<8x48xbf16>, vector<48x32xbf16>, vector<8x32xf32> -> vector<8x32xf32>
    %55 = arith.addf %51, %54 : vector<8x32xf32>
    %cst_38 = arith.constant 0.000000e+00 : f32
    %56 = vector.broadcast %cst_38 : f32 to vector<8x32xf32>
    %57 = arith.maximumf %55, %56 : vector<8x32xf32>
    %58 = arith.truncf %57 : vector<8x32xf32> to vector<8x32xbf16>
    %c0_39 = arith.constant 0 : index
    %c0_40 = arith.constant 0 : index
    %59 = vector.load %arg7[%c0_39, %c0_40] : memref<64x32xbf16, #tpu.memory_space<vmem>>, vector<32x32xbf16>
    %cst_41 = arith.constant dense<0.000000e+00> : vector<8x32xf32>
    %60 = tpu.matmul %58, %59, %cst_41 {dimension_numbers = #tpu.dot_dimension_numbers<[1], [0], [0], [1], [0, 0, 1, 1], [], []>} : vector<8x32xbf16>, vector<32x32xbf16>, vector<8x32xf32> -> vector<8x32xf32>
    %61 = vector.broadcast %41 : vector<1x32xf32> to vector<8x32xf32>
    %62 = arith.addf %61, %60 : vector<8x32xf32>
    %c0_42 = arith.constant 0 : index
    %c0_43 = arith.constant 0 : index
    %63 = vector.load %arg6[%c0_42, %c0_43] : memref<1x32xf32, #tpu.memory_space<vmem>>, vector<1x32xf32>
    %64 = arith.truncf %24 : vector<8x48xf32> to vector<8x48xbf16>
    %c0_44 = arith.constant 0 : index
    %c0_45 = arith.constant 0 : index
    %65 = vector.load %arg5[%c0_44, %c0_45] : memref<144x32xbf16, #tpu.memory_space<vmem>>, vector<48x32xbf16>
    %cst_46 = arith.constant dense<0.000000e+00> : vector<8x32xf32>
    %66 = tpu.matmul %64, %65, %cst_46 {dimension_numbers = #tpu.dot_dimension_numbers<[1], [0], [0], [1], [0, 0, 1, 1], [], []>} : vector<8x48xbf16>, vector<48x32xbf16>, vector<8x32xf32> -> vector<8x32xf32>
    %67 = vector.broadcast %63 : vector<1x32xf32> to vector<8x32xf32>
    %68 = arith.addf %67, %66 : vector<8x32xf32>
    %69 = arith.truncf %32 : vector<8x48xf32> to vector<8x48xbf16>
    %c48_47 = arith.constant 48 : index
    %c0_48 = arith.constant 0 : index
    %70 = vector.load %arg5[%c48_47, %c0_48] : memref<144x32xbf16, #tpu.memory_space<vmem>>, vector<48x32xbf16>
    %cst_49 = arith.constant dense<0.000000e+00> : vector<8x32xf32>
    %71 = tpu.matmul %69, %70, %cst_49 {dimension_numbers = #tpu.dot_dimension_numbers<[1], [0], [0], [1], [0, 0, 1, 1], [], []>} : vector<8x48xbf16>, vector<48x32xbf16>, vector<8x32xf32> -> vector<8x32xf32>
    %72 = arith.addf %68, %71 : vector<8x32xf32>
    %73 = arith.truncf %40 : vector<8x48xf32> to vector<8x48xbf16>
    %c96_50 = arith.constant 96 : index
    %c0_51 = arith.constant 0 : index
    %74 = vector.load %arg5[%c96_50, %c0_51] : memref<144x32xbf16, #tpu.memory_space<vmem>>, vector<48x32xbf16>
    %cst_52 = arith.constant dense<0.000000e+00> : vector<8x32xf32>
    %75 = tpu.matmul %73, %74, %cst_52 {dimension_numbers = #tpu.dot_dimension_numbers<[1], [0], [0], [1], [0, 0, 1, 1], [], []>} : vector<8x48xbf16>, vector<48x32xbf16>, vector<8x32xf32> -> vector<8x32xf32>
    %76 = arith.addf %72, %75 : vector<8x32xf32>
    %cst_53 = arith.constant 0.000000e+00 : f32
    %77 = vector.broadcast %cst_53 : f32 to vector<8x32xf32>
    %78 = arith.maximumf %76, %77 : vector<8x32xf32>
    %79 = arith.truncf %78 : vector<8x32xf32> to vector<8x32xbf16>
    %c32 = arith.constant 32 : index
    %c0_54 = arith.constant 0 : index
    %80 = vector.load %arg7[%c32, %c0_54] : memref<64x32xbf16, #tpu.memory_space<vmem>>, vector<32x32xbf16>
    %cst_55 = arith.constant dense<0.000000e+00> : vector<8x32xf32>
    %81 = tpu.matmul %79, %80, %cst_55 {dimension_numbers = #tpu.dot_dimension_numbers<[1], [0], [0], [1], [0, 0, 1, 1], [], []>} : vector<8x32xbf16>, vector<32x32xbf16>, vector<8x32xf32> -> vector<8x32xf32>
    %82 = arith.addf %62, %81 : vector<8x32xf32>
    %cst_56 = arith.constant 0.000000e+00 : f32
    %83 = vector.broadcast %cst_56 : f32 to vector<8x32xf32>
    %84 = arith.maximumf %82, %83 : vector<8x32xf32>
    %c0_57 = arith.constant 0 : index
    %c0_58 = arith.constant 0 : index
    %85 = vector.load %arg2[%c0_57, %c0_58] : memref<8x1xf32, #tpu.memory_space<vmem>>, vector<8x1xf32>
    %c0_59 = arith.constant 0 : index
    %c0_60 = arith.constant 0 : index
    %86 = vector.load %arg9[%c0_59, %c0_60] : memref<1x16xf32, #tpu.memory_space<vmem>>, vector<1x16xf32>
    %87 = vector.broadcast %85 : vector<8x1xf32> to vector<8x16xf32>
    %88 = vector.broadcast %86 : vector<1x16xf32> to vector<8x16xf32>
    %89 = arith.mulf %87, %88 : vector<8x16xf32>
    %c0_61 = arith.constant 0 : index
    %c0_62 = arith.constant 0 : index
    %90 = vector.load %arg10[%c0_61, %c0_62] : memref<1x16xf32, #tpu.memory_space<vmem>>, vector<1x16xf32>
    %91 = vector.broadcast %90 : vector<1x16xf32> to vector<8x16xf32>
    %92 = arith.addf %89, %91 : vector<8x16xf32>
    %cst_63 = arith.constant 0.000000e+00 : f32
    %93 = vector.broadcast %cst_63 : f32 to vector<8x16xf32>
    %94 = arith.maximumf %92, %93 : vector<8x16xf32>
    %95 = arith.truncf %94 : vector<8x16xf32> to vector<8x16xbf16>
    %c0_64 = arith.constant 0 : index
    %c0_65 = arith.constant 0 : index
    %96 = vector.load %arg11[%c0_64, %c0_65] : memref<16x16xbf16, #tpu.memory_space<vmem>>, vector<16x16xbf16>
    %cst_66 = arith.constant dense<0.000000e+00> : vector<8x16xf32>
    %97 = tpu.matmul %95, %96, %cst_66 {dimension_numbers = #tpu.dot_dimension_numbers<[1], [0], [0], [1], [0, 0, 1, 1], [], []>} : vector<8x16xbf16>, vector<16x16xbf16>, vector<8x16xf32> -> vector<8x16xf32>
    %c0_67 = arith.constant 0 : index
    %c0_68 = arith.constant 0 : index
    %98 = vector.load %arg12[%c0_67, %c0_68] : memref<1x16xf32, #tpu.memory_space<vmem>>, vector<1x16xf32>
    %99 = vector.broadcast %98 : vector<1x16xf32> to vector<8x16xf32>
    %100 = arith.addf %97, %99 : vector<8x16xf32>
    %cst_69 = arith.constant 0.000000e+00 : f32
    %101 = vector.broadcast %cst_69 : f32 to vector<8x16xf32>
    %102 = arith.maximumf %100, %101 : vector<8x16xf32>
    %103 = arith.truncf %84 : vector<8x32xf32> to vector<8x32xbf16>
    %c0_70 = arith.constant 0 : index
    %c0_71 = arith.constant 0 : index
    %104 = vector.load %arg13[%c0_70, %c0_71] : memref<32x32xbf16, #tpu.memory_space<vmem>>, vector<32x32xbf16>
    %cst_72 = arith.constant dense<0.000000e+00> : vector<8x32xf32>
    %105 = tpu.matmul %103, %104, %cst_72 {dimension_numbers = #tpu.dot_dimension_numbers<[1], [0], [0], [1], [0, 0, 1, 1], [], []>} : vector<8x32xbf16>, vector<32x32xbf16>, vector<8x32xf32> -> vector<8x32xf32>
    %106 = arith.truncf %102 : vector<8x16xf32> to vector<8x16xbf16>
    %c0_73 = arith.constant 0 : index
    %c0_74 = arith.constant 0 : index
    %107 = vector.load %arg14[%c0_73, %c0_74] : memref<16x32xbf16, #tpu.memory_space<vmem>>, vector<16x32xbf16>
    %cst_75 = arith.constant dense<0.000000e+00> : vector<8x32xf32>
    %108 = tpu.matmul %106, %107, %cst_75 {dimension_numbers = #tpu.dot_dimension_numbers<[1], [0], [0], [1], [0, 0, 1, 1], [], []>} : vector<8x16xbf16>, vector<16x32xbf16>, vector<8x32xf32> -> vector<8x32xf32>
    %109 = arith.addf %105, %108 : vector<8x32xf32>
    %c0_76 = arith.constant 0 : index
    %c0_77 = arith.constant 0 : index
    %110 = vector.load %arg15[%c0_76, %c0_77] : memref<1x32xf32, #tpu.memory_space<vmem>>, vector<1x32xf32>
    %111 = vector.broadcast %110 : vector<1x32xf32> to vector<8x32xf32>
    %112 = arith.addf %109, %111 : vector<8x32xf32>
    %cst_78 = arith.constant 0.000000e+00 : f32
    %113 = vector.broadcast %cst_78 : f32 to vector<8x32xf32>
    %114 = arith.maximumf %112, %113 : vector<8x32xf32>
    %115 = arith.truncf %114 : vector<8x32xf32> to vector<8x32xbf16>
    %c0_79 = arith.constant 0 : index
    %c0_80 = arith.constant 0 : index
    %116 = vector.load %arg16[%c0_79, %c0_80] : memref<32x80xbf16, #tpu.memory_space<vmem>>, vector<32x80xbf16>
    %cst_81 = arith.constant dense<0.000000e+00> : vector<8x80xf32>
    %117 = tpu.matmul %115, %116, %cst_81 {dimension_numbers = #tpu.dot_dimension_numbers<[1], [0], [0], [1], [0, 0, 1, 1], [], []>} : vector<8x32xbf16>, vector<32x80xbf16>, vector<8x80xf32> -> vector<8x80xf32>
    %118 = arith.truncf %84 : vector<8x32xf32> to vector<8x32xbf16>
    %c0_82 = arith.constant 0 : index
    %c0_83 = arith.constant 0 : index
    %119 = vector.load %arg17[%c0_82, %c0_83] : memref<32x80xbf16, #tpu.memory_space<vmem>>, vector<32x80xbf16>
    %cst_84 = arith.constant dense<0.000000e+00> : vector<8x80xf32>
    %120 = tpu.matmul %118, %119, %cst_84 {dimension_numbers = #tpu.dot_dimension_numbers<[1], [0], [0], [1], [0, 0, 1, 1], [], []>} : vector<8x32xbf16>, vector<32x80xbf16>, vector<8x80xf32> -> vector<8x80xf32>
    %121 = arith.addf %117, %120 : vector<8x80xf32>
    %c0_85 = arith.constant 0 : index
    %c0_86 = arith.constant 0 : index
    %122 = vector.load %arg18[%c0_85, %c0_86] : memref<1x80xf32, #tpu.memory_space<vmem>>, vector<1x80xf32>
    %123 = vector.broadcast %122 : vector<1x80xf32> to vector<8x80xf32>
    %124 = arith.addf %121, %123 : vector<8x80xf32>
    %cst_87 = arith.constant 0.000000e+00 : f32
    %125 = vector.broadcast %cst_87 : f32 to vector<8x80xf32>
    %126 = arith.maximumf %124, %125 : vector<8x80xf32>
    %127 = arith.truncf %126 : vector<8x80xf32> to vector<8x80xbf16>
    %c0_88 = arith.constant 0 : index
    %c0_89 = arith.constant 0 : index
    %128 = vector.load %arg19[%c0_88, %c0_89] : memref<80x80xbf16, #tpu.memory_space<vmem>>, vector<80x80xbf16>
    %cst_90 = arith.constant dense<0.000000e+00> : vector<8x80xf32>
    %129 = tpu.matmul %127, %128, %cst_90 {dimension_numbers = #tpu.dot_dimension_numbers<[1], [0], [0], [1], [0, 0, 1, 1], [], []>} : vector<8x80xbf16>, vector<80x80xbf16>, vector<8x80xf32> -> vector<8x80xf32>
    %c0_91 = arith.constant 0 : index
    %c0_92 = arith.constant 0 : index
    %130 = vector.load %arg20[%c0_91, %c0_92] : memref<1x80xf32, #tpu.memory_space<vmem>>, vector<1x80xf32>
    %131 = vector.broadcast %130 : vector<1x80xf32> to vector<8x80xf32>
    %132 = arith.addf %129, %131 : vector<8x80xf32>
    %cst_93 = arith.constant 0.000000e+00 : f32
    %133 = vector.broadcast %cst_93 : f32 to vector<8x80xf32>
    %134 = arith.maximumf %132, %133 : vector<8x80xf32>
    %135 = arith.truncf %134 : vector<8x80xf32> to vector<8x80xbf16>
    %c0_94 = arith.constant 0 : index
    %c0_95 = arith.constant 0 : index
    %136 = vector.load %arg21[%c0_94, %c0_95] : memref<80x128xbf16, #tpu.memory_space<vmem>>, vector<80x128xbf16>
    %cst_96 = arith.constant dense<0.000000e+00> : vector<8x128xf32>
    %137 = tpu.matmul %135, %136, %cst_96 {dimension_numbers = #tpu.dot_dimension_numbers<[1], [0], [0], [1], [0, 0, 1, 1], [], []>} : vector<8x80xbf16>, vector<80x128xbf16>, vector<8x128xf32> -> vector<8x128xf32>
    %c0_97 = arith.constant 0 : index
    %c0_98 = arith.constant 0 : index
    %138 = vector.load %arg22[%c0_97, %c0_98] : memref<1x128xf32, #tpu.memory_space<vmem>>, vector<1x128xf32>
    %139 = vector.broadcast %138 : vector<1x128xf32> to vector<8x128xf32>
    %140 = arith.addf %137, %139 : vector<8x128xf32>
    %c0_99 = arith.constant 0 : index
    %c0_100 = arith.constant 0 : index
    %141 = vector.load %arg23[%c0_99, %c0_100] : memref<8x128xf32, #tpu.memory_space<vmem>>, vector<8x128xf32>
    tpu.vector_store %arg23[%c0_99, %c0_100], %140 {strides = array<i32>} : memref<8x128xf32, #tpu.memory_space<vmem>>, vector<8x128xf32>,
    return
  }
  func.func @transform_0(%arg0: i32) -> (i32, i32) {
    %c0_i32 = arith.constant 0 : i32
    %c0_i32_0 = arith.constant 0 : i32
    return %arg0, %c0_i32 : i32, i32
  }
  func.func @transform_1(%arg0: i32) -> (i32, i32) {
    %c0_i32 = arith.constant 0 : i32
    %c0_i32_0 = arith.constant 0 : i32
    return %arg0, %c0_i32 : i32, i32
  }
  func.func @transform_2(%arg0: i32) -> (i32, i32) {
    %c0_i32 = arith.constant 0 : i32
    %c0_i32_0 = arith.constant 0 : i32
    %c0_i32_1 = arith.constant 0 : i32
    return %c0_i32, %c0_i32_0 : i32, i32
  }
  func.func @transform_3(%arg0: i32) -> (i32, i32) {
    %c0_i32 = arith.constant 0 : i32
    %c0_i32_0 = arith.constant 0 : i32
    %c0_i32_1 = arith.constant 0 : i32
    return %c0_i32, %c0_i32_0 : i32, i32
  }
  func.func @transform_4(%arg0: i32) -> (i32, i32) {
    %c0_i32 = arith.constant 0 : i32
    %c0_i32_0 = arith.constant 0 : i32
    %c0_i32_1 = arith.constant 0 : i32
    return %c0_i32, %c0_i32_0 : i32, i32
  }
  func.func @transform_5(%arg0: i32) -> (i32, i32) {
    %c0_i32 = arith.constant 0 : i32
    %c0_i32_0 = arith.constant 0 : i32
    %c0_i32_1 = arith.constant 0 : i32
    return %c0_i32, %c0_i32_0 : i32, i32
  }
  func.func @transform_6(%arg0: i32) -> (i32, i32) {
    %c0_i32 = arith.constant 0 : i32
    %c0_i32_0 = arith.constant 0 : i32
    %c0_i32_1 = arith.constant 0 : i32
    return %c0_i32, %c0_i32_0 : i32, i32
  }
  func.func @transform_7(%arg0: i32) -> (i32, i32) {
    %c0_i32 = arith.constant 0 : i32
    %c0_i32_0 = arith.constant 0 : i32
    %c0_i32_1 = arith.constant 0 : i32
    return %c0_i32, %c0_i32_0 : i32, i32
  }
  func.func @transform_8(%arg0: i32) -> (i32, i32) {
    %c0_i32 = arith.constant 0 : i32
    %c0_i32_0 = arith.constant 0 : i32
    %c0_i32_1 = arith.constant 0 : i32
    return %c0_i32, %c0_i32_0 : i32, i32
  }
  func.func @transform_9(%arg0: i32) -> (i32, i32) {
    %c0_i32 = arith.constant 0 : i32
    %c0_i32_0 = arith.constant 0 : i32
    %c0_i32_1 = arith.constant 0 : i32
    return %c0_i32, %c0_i32_0 : i32, i32
  }
  func.func @transform_10(%arg0: i32) -> (i32, i32) {
    %c0_i32 = arith.constant 0 : i32
    %c0_i32_0 = arith.constant 0 : i32
    %c0_i32_1 = arith.constant 0 : i32
    return %c0_i32, %c0_i32_0 : i32, i32
  }
  func.func @transform_11(%arg0: i32) -> (i32, i32) {
    %c0_i32 = arith.constant 0 : i32
    %c0_i32_0 = arith.constant 0 : i32
    %c0_i32_1 = arith.constant 0 : i32
    return %c0_i32, %c0_i32_0 : i32, i32
  }
  func.func @transform_12(%arg0: i32) -> (i32, i32) {
    %c0_i32 = arith.constant 0 : i32
    %c0_i32_0 = arith.constant 0 : i32
    %c0_i32_1 = arith.constant 0 : i32
    return %c0_i32, %c0_i32_0 : i32, i32
  }
  func.func @transform_13(%arg0: i32) -> (i32, i32) {
    %c0_i32 = arith.constant 0 : i32
    %c0_i32_0 = arith.constant 0 : i32
    %c0_i32_1 = arith.constant 0 : i32
    return %c0_i32, %c0_i32_0 : i32, i32
  }
  func.func @transform_14(%arg0: i32) -> (i32, i32) {
    %c0_i32 = arith.constant 0 : i32
    %c0_i32_0 = arith.constant 0 : i32
    %c0_i32_1 = arith.constant 0 : i32
    return %c0_i32, %c0_i32_0 : i32, i32
  }
  func.func @transform_15(%arg0: i32) -> (i32, i32) {
    %c0_i32 = arith.constant 0 : i32
    %c0_i32_0 = arith.constant 0 : i32
    %c0_i32_1 = arith.constant 0 : i32
    return %c0_i32, %c0_i32_0 : i32, i32
  }
  func.func @transform_16(%arg0: i32) -> (i32, i32) {
    %c0_i32 = arith.constant 0 : i32
    %c0_i32_0 = arith.constant 0 : i32
    %c0_i32_1 = arith.constant 0 : i32
    return %c0_i32, %c0_i32_0 : i32, i32
  }
  func.func @transform_17(%arg0: i32) -> (i32, i32) {
    %c0_i32 = arith.constant 0 : i32
    %c0_i32_0 = arith.constant 0 : i32
    %c0_i32_1 = arith.constant 0 : i32
    return %c0_i32, %c0_i32_0 : i32, i32
  }
  func.func @transform_18(%arg0: i32) -> (i32, i32) {
    %c0_i32 = arith.constant 0 : i32
    %c0_i32_0 = arith.constant 0 : i32
    %c0_i32_1 = arith.constant 0 : i32
    return %c0_i32, %c0_i32_0 : i32, i32
  }
  func.func @transform_19(%arg0: i32) -> (i32, i32) {
    %c0_i32 = arith.constant 0 : i32
    %c0_i32_0 = arith.constant 0 : i32
    %c0_i32_1 = arith.constant 0 : i32
    return %c0_i32, %c0_i32_0 : i32, i32
  }
  func.func @transform_20(%arg0: i32) -> (i32, i32) {
    %c0_i32 = arith.constant 0 : i32
    %c0_i32_0 = arith.constant 0 : i32
    %c0_i32_1 = arith.constant 0 : i32
    return %c0_i32, %c0_i32_0 : i32, i32
  }
  func.func @transform_21(%arg0: i32) -> (i32, i32) {
    %c0_i32 = arith.constant 0 : i32
    %c0_i32_0 = arith.constant 0 : i32
    %c0_i32_1 = arith.constant 0 : i32
    return %c0_i32, %c0_i32_0 : i32, i32
  }
  func.func @transform_22(%arg0: i32) -> (i32, i32) {
    %c0_i32 = arith.constant 0 : i32
    %c0_i32_0 = arith.constant 0 : i32
    return %arg0, %c0_i32 : i32, i32
  }
}

</mosaic_0001>

<llo_original>
// kernel: _lambda_.1
$region0: #{_lambda_.1}
  #allocation0 [shape = 'u32[]', space=smem, size = 0x4, offset = 0x4, fixed_abs, tag = 'smem constant byte address 0x4 - core index']
  #allocation1 [shape = 'u32[72,128]{1,0:T(1,128)}', space=vmem, size = 0x9000, scoped, tag = 'internal scratch']
  %s0 = inlined_call_operand.vmem [shape: f32[8,768], index: 0, kind: input, shape index: {}]
  %s1 = inlined_call_operand.vmem [shape: f32[8,1], index: 1, kind: input, shape index: {}]
  %s2 = inlined_call_operand.vmem [shape: bf16[240,48], index: 2, kind: input, shape index: {}]
  %s3 = inlined_call_operand.vmem [shape: f32[1,48], index: 3, kind: input, shape index: {}]
  %s4 = inlined_call_operand.vmem [shape: bf16[144,32], index: 4, kind: input, shape index: {}]
  %s5 = inlined_call_operand.vmem [shape: f32[1,32], index: 5, kind: input, shape index: {}]
  %s6 = inlined_call_operand.vmem [shape: bf16[64,32], index: 6, kind: input, shape index: {}]
  %s7 = inlined_call_operand.vmem [shape: f32[1,32], index: 7, kind: input, shape index: {}]
  %s8 = inlined_call_operand.vmem [shape: f32[1,16], index: 8, kind: input, shape index: {}]
  %s9 = inlined_call_operand.vmem [shape: f32[1,16], index: 9, kind: input, shape index: {}]
  %s10 = inlined_call_operand.vmem [shape: bf16[16,16], index: 10, kind: input, shape index: {}]
  %s11 = inlined_call_operand.vmem [shape: f32[1,16], index: 11, kind: input, shape index: {}]
  %s12 = inlined_call_operand.vmem [shape: bf16[32,32], index: 12, kind: input, shape index: {}]
  %s13 = inlined_call_operand.vmem [shape: bf16[16,32], index: 13, kind: input, shape index: {}]
  %s14 = inlined_call_operand.vmem [shape: f32[1,32], index: 14, kind: input, shape index: {}]
  %s15 = inlined_call_operand.vmem [shape: bf16[32,80], index: 15, kind: input, shape index: {}]
  %s16 = inlined_call_operand.vmem [shape: bf16[32,80], index: 16, kind: input, shape index: {}]
  %s17 = inlined_call_operand.vmem [shape: f32[1,80], index: 17, kind: input, shape index: {}]
  %s18 = inlined_call_operand.vmem [shape: bf16[80,80], index: 18, kind: input, shape index: {}]
  %s19 = inlined_call_operand.vmem [shape: f32[1,80], index: 19, kind: input, shape index: {}]
  %s20 = inlined_call_operand.vmem [shape: bf16[80,128], index: 20, kind: input, shape index: {}]
  %s21 = inlined_call_operand.vmem [shape: f32[1,128], index: 21, kind: input, shape index: {}]
  %s22 = inlined_call_operand.vmem [shape: f32[8,128], index: 22, kind: output, shape index: {}]
  %s23 = sld [smem:[#allocation0]]
  $region98: #{_lambda_.1} parent=0
    _
  %s25 = ssub.s32 1, %s23
  %s26 = scalar_select 0, %s25, %s23
  // Predicated region
  $region2: #{_lambda_.1} parent=0 // pred_check
    _
  $region3: #{_lambda_.1} parent=0 // pred_check_branch
    %28 = sbr.rel (0) target = $region5
  $region4: #{_lambda_.1} parent=0 // pred_region
    _
  $region5: #{_lambda_.1} parent=0 // pred_fallthru
    _
  // Predicated region
  $region6: #{_lambda_.1} parent=0 // pred_check
    _
  $region7: #{_lambda_.1} parent=0 // pred_check_branch
    %30 = sbr.rel (0) target = $region9
  $region8: #{_lambda_.1} parent=0 // pred_region
    _
  $region9: #{_lambda_.1} parent=0 // pred_fallthru
    _
  // Predicated region
  $region10: #{_lambda_.1} parent=0 // pred_check
    _
  $region11: #{_lambda_.1} parent=0 // pred_check_branch
    %32 = sbr.rel (0) target = $region13
  $region12: #{_lambda_.1} parent=0 // pred_region
    _
  $region13: #{_lambda_.1} parent=0 // pred_fallthru
    _
  // Predicated region
  $region14: #{_lambda_.1} parent=0 // pred_check
    _
  $region15: #{_lambda_.1} parent=0 // pred_check_branch
    %34 = sbr.rel (0) target = $region17
  $region16: #{_lambda_.1} parent=0 // pred_region
    _
  $region17: #{_lambda_.1} parent=0 // pred_fallthru
    _
  // Predicated region
  $region18: #{_lambda_.1} parent=0 // pred_check
    _
  $region19: #{_lambda_.1} parent=0 // pred_check_branch
    %36 = sbr.rel (0) target = $region21
  $region20: #{_lambda_.1} parent=0 // pred_region
    _
  $region21: #{_lambda_.1} parent=0 // pred_fallthru
    _
  // Predicated region
  $region22: #{_lambda_.1} parent=0 // pred_check
    _
  $region23: #{_lambda_.1} parent=0 // pred_check_branch
    %38 = sbr.rel (0) target = $region25
  $region24: #{_lambda_.1} parent=0 // pred_region
    _
  $region25: #{_lambda_.1} parent=0 // pred_fallthru
    _
  // Predicated region
  $region26: #{_lambda_.1} parent=0 // pred_check
    _
  $region27: #{_lambda_.1} parent=0 // pred_check_branch
    %40 = sbr.rel (0) target = $region29
  $region28: #{_lambda_.1} parent=0 // pred_region
    _
  $region29: #{_lambda_.1} parent=0 // pred_fallthru
    _
  // Predicated region
  $region30: #{_lambda_.1} parent=0 // pred_check
    _
  $region31: #{_lambda_.1} parent=0 // pred_check_branch
    %42 = sbr.rel (0) target = $region33
  $region32: #{_lambda_.1} parent=0 // pred_region
    _
  $region33: #{_lambda_.1} parent=0 // pred_fallthru
    _
  // Predicated region
  $region34: #{_lambda_.1} parent=0 // pred_check
    _
  $region35: #{_lambda_.1} parent=0 // pred_check_branch
    %44 = sbr.rel (0) target = $region37
  $region36: #{_lambda_.1} parent=0 // pred_region
    _
  $region37: #{_lambda_.1} parent=0 // pred_fallthru
    _
  // Predicated region
  $region38: #{_lambda_.1} parent=0 // pred_check
    _
  $region39: #{_lambda_.1} parent=0 // pred_check_branch
    %46 = sbr.rel (0) target = $region41
  $region40: #{_lambda_.1} parent=0 // pred_region
    _
  $region41: #{_lambda_.1} parent=0 // pred_fallthru
    _
  // Predicated region
  $region42: #{_lambda_.1} parent=0 // pred_check
    _
  $region43: #{_lambda_.1} parent=0 // pred_check_branch
    %48 = sbr.rel (0) target = $region45
  $region44: #{_lambda_.1} parent=0 // pred_region
    _
  $region45: #{_lambda_.1} parent=0 // pred_fallthru
    _
  // Predicated region
  $region46: #{_lambda_.1} parent=0 // pred_check
    _
  $region47: #{_lambda_.1} parent=0 // pred_check_branch
    %50 = sbr.rel (0) target = $region49
  $region48: #{_lambda_.1} parent=0 // pred_region
    _
  $region49: #{_lambda_.1} parent=0 // pred_fallthru
    _
  // Predicated region
  $region50: #{_lambda_.1} parent=0 // pred_check
    _
  $region51: #{_lambda_.1} parent=0 // pred_check_branch
    %52 = sbr.rel (0) target = $region53
  $region52: #{_lambda_.1} parent=0 // pred_region
    _
  $region53: #{_lambda_.1} parent=0 // pred_fallthru
    _
  // Predicated region
  $region54: #{_lambda_.1} parent=0 // pred_check
    _
  $region55: #{_lambda_.1} parent=0 // pred_check_branch
    %54 = sbr.rel (0) target = $region57
  $region56: #{_lambda_.1} parent=0 // pred_region
    _
  $region57: #{_lambda_.1} parent=0 // pred_fallthru
    _
  // Predicated region
  $region58: #{_lambda_.1} parent=0 // pred_check
    _
  $region59: #{_lambda_.1} parent=0 // pred_check_branch
    %56 = sbr.rel (0) target = $region61
  $region60: #{_lambda_.1} parent=0 // pred_region
    _
  $region61: #{_lambda_.1} parent=0 // pred_fallthru
    _
  // Predicated region
  $region62: #{_lambda_.1} parent=0 // pred_check
    _
  $region63: #{_lambda_.1} parent=0 // pred_check_branch
    %58 = sbr.rel (0) target = $region65
  $region64: #{_lambda_.1} parent=0 // pred_region
    _
  $region65: #{_lambda_.1} parent=0 // pred_fallthru
    _
  // Predicated region
  $region66: #{_lambda_.1} parent=0 // pred_check
    _
  $region67: #{_lambda_.1} parent=0 // pred_check_branch
    %60 = sbr.rel (0) target = $region69
  $region68: #{_lambda_.1} parent=0 // pred_region
    _
  $region69: #{_lambda_.1} parent=0 // pred_fallthru
    _
  // Predicated region
  $region70: #{_lambda_.1} parent=0 // pred_check
    _
  $region71: #{_lambda_.1} parent=0 // pred_check_branch
    %62 = sbr.rel (0) target = $region73
  $region72: #{_lambda_.1} parent=0 // pred_region
    _
  $region73: #{_lambda_.1} parent=0 // pred_fallthru
    _
  // Predicated region
  $region74: #{_lambda_.1} parent=0 // pred_check
    _
  $region75: #{_lambda_.1} parent=0 // pred_check_branch
    %64 = sbr.rel (0) target = $region77
  $region76: #{_lambda_.1} parent=0 // pred_region
    _
  $region77: #{_lambda_.1} parent=0 // pred_fallthru
    _
  // Predicated region
  $region78: #{_lambda_.1} parent=0 // pred_check
    _
  $region79: #{_lambda_.1} parent=0 // pred_check_branch
    %66 = sbr.rel (0) target = $region81
  $region80: #{_lambda_.1} parent=0 // pred_region
    _
  $region81: #{_lambda_.1} parent=0 // pred_fallthru
    _
  // Predicated region
  $region82: #{_lambda_.1} parent=0 // pred_check
    _
  $region83: #{_lambda_.1} parent=0 // pred_check_branch
    %68 = sbr.rel (0) target = $region85
  $region84: #{_lambda_.1} parent=0 // pred_region
    _
  $region85: #{_lambda_.1} parent=0 // pred_fallthru
    _
  // Predicated region
  $region86: #{_lambda_.1} parent=0 // pred_check
    _
  $region87: #{_lambda_.1} parent=0 // pred_check_branch
    %70 = sbr.rel (0) target = $region89
  $region88: #{_lambda_.1} parent=0 // pred_region
    _
  $region89: #{_lambda_.1} parent=0 // pred_fallthru
    _
  %v72 = vld [vmem:[%s2] sm:$0xf]
  %v73 = vld [vmem:[%s2 + $0x4] sm:$0xf]
  %v74 = vld [vmem:[%s2 + $0x8] sm:$0xf]
  %v75 = vld [vmem:[%s2 + $0xc] sm:$0xf]
  %v76 = vld [vmem:[%s2 + $0x10] sm:$0xf]
  %v77 = vld [vmem:[%s2 + $0x14] sm:$0xf]
  %v78 = vld [vmem:[%s2 + $0x18] sm:$0xf]
  %v79 = vld [vmem:[%s2 + $0x1c] sm:$0xf]
  %v80 = vld [vmem:[%s2 + $0x20] sm:$0xf]
  %v81 = vld [vmem:[%s2 + $0x24] sm:$0xf]
  %v82 = vld [vmem:[%s2 + $0x28] sm:$0xf]
  %v83 = vld [vmem:[%s2 + $0x2c] sm:$0xf]
  %v84 = vld [vmem:[%s2 + $0x30] sm:$0xf]
  %v85 = vld [vmem:[%s2 + $0x34] sm:$0xf]
  %v86 = vld [vmem:[%s2 + $0x38] sm:$0xf]
  %v87 = vld [vmem:[%s2 + $0x3c] sm:$0xf]
  %v88 = vld [vmem:[%s2 + $0x40] sm:$0xf]
  %v89 = vld [vmem:[%s2 + $0x44] sm:$0xf]
  %v90 = vld [vmem:[%s2 + $0x48] sm:$0xf]
  %v91 = vld [vmem:[%s2 + $0x4c] sm:$0xf]
  %v92 = vld [vmem:[%s2 + $0x50] sm:$0xf]
  %v93 = vld [vmem:[%s2 + $0x54] sm:$0xf]
  %v94 = vld [vmem:[%s2 + $0x58] sm:$0xf]
  %v95 = vld [vmem:[%s2 + $0x5c] sm:$0xf]
  %v96 = vld [vmem:[%s2 + $0x60] sm:$0xf]
  %v97 = vld [vmem:[%s2 + $0x64] sm:$0xf]
  %v98 = vld [vmem:[%s2 + $0x68] sm:$0xf]
  %v99 = vld [vmem:[%s2 + $0x6c] sm:$0xf]
  %v100 = vld [vmem:[%s2 + $0x70] sm:$0xf]
  %v101 = vld [vmem:[%s2 + $0x74] sm:$0xf]
  %v102 = vld [vmem:[%s0] sm:$0xff]
  %v103 = vld [vmem:[%s0 + $0x8] sm:$0xff]
  %v104 = vpack.c.bf16 %v102, %v102
  %v105 = vpack.c.bf16 %v103, %v103
  %v106 = vld [vmem:[%s3] sm:$0x1]
  %v108 = vperm.slane %v106, 0
  %v140 = vunpack.c.l.b16 %v72
  %v141 = vunpack.c.l.b16 %v73
  %v142 = vunpack.c.l.b16 %v74
  %v143 = vunpack.c.l.b16 %v75
  %v144 = vunpack.c.l.b16 %v76
  %v145 = vunpack.c.l.b16 %v77
  %v146 = vunpack.c.l.b16 %v78
  %v147 = vunpack.c.l.b16 %v79
  %v148 = vunpack.c.l.b16 %v80
  %v149 = vunpack.c.l.b16 %v81
  %v150 = vunpack.c.l.b16 %v82
  %v151 = vunpack.c.l.b16 %v83
  %v152 = vunpack.c.l.b16 %v84
  %v153 = vunpack.c.l.b16 %v85
  %v154 = vunpack.c.l.b16 %v86
  %v155 = vunpack.c.l.b16 %v87
  %v156 = vunpack.c.l.b16 %v88
  %v157 = vunpack.c.l.b16 %v89
  %v158 = vunpack.c.l.b16 %v90
  %v159 = vunpack.c.l.b16 %v91
  %v160 = vunpack.c.l.b16 %v92
  %v161 = vunpack.c.l.b16 %v93
  %v162 = vunpack.c.l.b16 %v94
  %v163 = vunpack.c.l.b16 %v95
  %v164 = vunpack.c.l.b16 %v96
  %v165 = vunpack.c.l.b16 %v97
  %v166 = vunpack.c.l.b16 %v98
  %v167 = vunpack.c.l.b16 %v99
  %v168 = vunpack.c.l.b16 %v100
  %v169 = vunpack.c.l.b16 %v101
  %v170 = vpack.c.b16 %v141, %v140
  %v171 = vpack.c.b16 %v143, %v142
  %v172 = vpack.c.b16 %v145, %v144
  %v173 = vpack.c.b16 %v147, %v146
  %v174 = vpack.c.b16 %v149, %v148
  %v175 = vpack.c.b16 %v151, %v150
  %v176 = vpack.c.b16 %v153, %v152
  %v177 = vpack.c.b16 %v155, %v154
  %v178 = vpack.c.b16 %v157, %v156
  %v179 = vpack.c.b16 %v159, %v158
  %v180 = vpack.c.b16 %v161, %v160
  %v181 = vpack.c.b16 %v163, %v162
  %v182 = vpack.c.b16 %v165, %v164
  %v183 = vpack.c.b16 %v167, %v166
  %v184 = vpack.c.b16 %v169, %v168
  %vm200 = vcmask 916480
  %v202 = vsel %vm200, %v105, 0
  %204 = vmatpush.bf16.msra.mxu0 %v177
  %205 = vmatpush.bf16.msra.mxu0 %v176
  %206 = vmatpush.bf16.msra.mxu0 %v175
  %207 = vmatpush.bf16.msra.mxu0 %v174
  %208 = vmatpush.bf16.msra.mxu0 %v173
  %209 = vmatpush.bf16.msra.mxu0 %v172
  %210 = vmatpush.bf16.msra.mxu0 %v171
  %211 = vmatpush.bf16.msra.mxu0 %v170
  %212 = vmatmul.bf16.gmra.mxu0 %v104
  %v213 = vpop.f32.mrf.mxu0
  %v214 = vadd.f32 %v108, %v213
  %v215 = vpop.f32.mrf.mxu0
  %216 = vdwg.mxu0
  %217 = vmatpush.bf16.msra.mxu0 0
  %218 = vmatpush.bf16.msra.mxu0 %v184
  %219 = vmatpush.bf16.msra.mxu0 %v183
  %220 = vmatpush.bf16.msra.mxu0 %v182
  %221 = vmatpush.bf16.msra.mxu0 %v181
  %222 = vmatpush.bf16.msra.mxu0 %v180
  %223 = vmatpush.bf16.msra.mxu0 %v179
  %224 = vmatpush.bf16.msra.mxu0 %v178
  %225 = vmatmul.bf16.gmra.mxu0 %v202
  %v226 = vpop.f32.mrf.mxu0
  %v227 = vadd.f32 %v214, %v226
  %v228 = vpop.f32.mrf.mxu0
  %229 = vdwg.mxu0
  %v230 = vmax.f32 %v227, 0.0
  %v231 = vld [vmem:[%s0] sm:$0xff]
  %v232 = vld [vmem:[%s0 + $0x8] sm:$0xff]
  %v233 = vld [vmem:[%s0 + $0x10] sm:$0xff]
  %v234 = vpack.c.bf16 %v231, %v231
  %v235 = vpack.c.bf16 %v232, %v232
  %v236 = vpack.c.bf16 %v233, %v233
  %240 = vrot.lane.b32.xlu0 %v234, 32
  %v241 = vpop.permute.xlu0 %240
  %242 = vrot.lane.b32.xlu0 %v235, 32
  %v243 = vpop.permute.xlu0 %242
  %244 = vrot.lane.b32.xlu0 %v236, 32
  %v245 = vpop.permute.xlu0 %244
  %vm246 = vcmask 261120
  %v247 = vsel %vm246, %v241, %v243
  %v248 = vsel %vm246, %v243, %v245
  %v251 = vsel %vm200, %v248, 0
  %253 = vmatpush.bf16.msra.mxu0 %v177
  %254 = vmatpush.bf16.msra.mxu0 %v176
  %255 = vmatpush.bf16.msra.mxu0 %v175
  %256 = vmatpush.bf16.msra.mxu0 %v174
  %257 = vmatpush.bf16.msra.mxu0 %v173
  %258 = vmatpush.bf16.msra.mxu0 %v172
  %259 = vmatpush.bf16.msra.mxu0 %v171
  %260 = vmatpush.bf16.msra.mxu0 %v170
  %261 = vmatmul.bf16.gmra.mxu0 %v247
  %v262 = vpop.f32.mrf.mxu0
  %v263 = vadd.f32 %v108, %v262
  %v264 = vpop.f32.mrf.mxu0
  %265 = vdwg.mxu0
  %266 = vmatpush.bf16.msra.mxu0 0
  %267 = vmatpush.bf16.msra.mxu0 %v184
  %268 = vmatpush.bf16.msra.mxu0 %v183
  %269 = vmatpush.bf16.msra.mxu0 %v182
  %270 = vmatpush.bf16.msra.mxu0 %v181
  %271 = vmatpush.bf16.msra.mxu0 %v180
  %272 = vmatpush.bf16.msra.mxu0 %v179
  %273 = vmatpush.bf16.msra.mxu0 %v178
  %274 = vmatmul.bf16.gmra.mxu0 %v251
  %v275 = vpop.f32.mrf.mxu0
  %v276 = vadd.f32 %v263, %v275
  %v277 = vpop.f32.mrf.mxu0
  %278 = vdwg.mxu0
  %v279 = vmax.f32 %v276, 0.0
  %v280 = vld [vmem:[%s0 + $0x8] sm:$0xff]
  %v281 = vld [vmem:[%s0 + $0x10] sm:$0xff]
  %v282 = vld [vmem:[%s0 + $0x18] sm:$0xff]
  %v283 = vpack.c.bf16 %v280, %v280
  %v284 = vpack.c.bf16 %v281, %v281
  %v285 = vpack.c.bf16 %v282, %v282
  %289 = vrot.lane.b32.xlu0 %v283, 64
  %v290 = vpop.permute.xlu0 %289
  %291 = vrot.lane.b32.xlu0 %v284, 64
  %v292 = vpop.permute.xlu0 %291
  %293 = vrot.lane.b32.xlu0 %v285, 64
  %v294 = vpop.permute.xlu0 %293
  %vm295 = vcmask 523264
  %v296 = vsel %vm295, %v290, %v292
  %v297 = vsel %vm295, %v292, %v294
  %v300 = vsel %vm200, %v297, 0
  %302 = vmatpush.bf16.msra.mxu0 %v177
  %303 = vmatpush.bf16.msra.mxu0 %v176
  %304 = vmatpush.bf16.msra.mxu0 %v175
  %305 = vmatpush.bf16.msra.mxu0 %v174
  %306 = vmatpush.bf16.msra.mxu0 %v173
  %307 = vmatpush.bf16.msra.mxu0 %v172
  %308 = vmatpush.bf16.msra.mxu0 %v171
  %309 = vmatpush.bf16.msra.mxu0 %v170
  %310 = vmatmul.bf16.gmra.mxu0 %v296
  %v311 = vpop.f32.mrf.mxu0
  %v312 = vadd.f32 %v108, %v311
  %v313 = vpop.f32.mrf.mxu0
  %314 = vdwg.mxu0
  %315 = vmatpush.bf16.msra.mxu0 0
  %316 = vmatpush.bf16.msra.mxu0 %v184
  %317 = vmatpush.bf16.msra.mxu0 %v183
  %318 = vmatpush.bf16.msra.mxu0 %v182
  %319 = vmatpush.bf16.msra.mxu0 %v181
  %320 = vmatpush.bf16.msra.mxu0 %v180
  %321 = vmatpush.bf16.msra.mxu0 %v179
  %322 = vmatpush.bf16.msra.mxu0 %v178
  %323 = vmatmul.bf16.gmra.mxu0 %v300
  %v324 = vpop.f32.mrf.mxu0
  %v325 = vadd.f32 %v312, %v324
  %v326 = vpop.f32.mrf.mxu0
  %327 = vdwg.mxu0
  %v328 = vmax.f32 %v325, 0.0
  %v329 = vld [vmem:[%s0 + $0x10] sm:$0xff]
  %v330 = vld [vmem:[%s0 + $0x18] sm:$0xff]
  %v331 = vld [vmem:[%s0 + $0x20] sm:$0xff]
  %v332 = vpack.c.bf16 %v329, %v329
  %v333 = vpack.c.bf16 %v330, %v330
  %v334 = vpack.c.bf16 %v331, %v331
  %338 = vrot.lane.b32.xlu0 %v332, 96
  %v339 = vpop.permute.xlu0 %338
  %340 = vrot.lane.b32.xlu0 %v333, 96
  %v341 = vpop.permute.xlu0 %340
  %342 = vrot.lane.b32.xlu0 %v334, 96
  %v343 = vpop.permute.xlu0 %342
  %vm344 = vcmask 785408
  %v345 = vsel %vm344, %v339, %v341
  %v346 = vsel %vm344, %v341, %v343
  %v349 = vsel %vm200, %v346, 0
  %351 = vmatpush.bf16.msra.mxu0 %v177
  %352 = vmatpush.bf16.msra.mxu0 %v176
  %353 = vmatpush.bf16.msra.mxu0 %v175
  %354 = vmatpush.bf16.msra.mxu0 %v174
  %355 = vmatpush.bf16.msra.mxu0 %v173
  %356 = vmatpush.bf16.msra.mxu0 %v172
  %357 = vmatpush.bf16.msra.mxu0 %v171
  %358 = vmatpush.bf16.msra.mxu0 %v170
  %359 = vmatmul.bf16.gmra.mxu0 %v345
  %v360 = vpop.f32.mrf.mxu0
  %v361 = vadd.f32 %v108, %v360
  %v362 = vpop.f32.mrf.mxu0
  %363 = vdwg.mxu0
  %364 = vmatpush.bf16.msra.mxu0 0
  %365 = vmatpush.bf16.msra.mxu0 %v184
  %366 = vmatpush.bf16.msra.mxu0 %v183
  %367 = vmatpush.bf16.msra.mxu0 %v182
  %368 = vmatpush.bf16.msra.mxu0 %v181
  %369 = vmatpush.bf16.msra.mxu0 %v180
  %370 = vmatpush.bf16.msra.mxu0 %v179
  %371 = vmatpush.bf16.msra.mxu0 %v178
  %372 = vmatmul.bf16.gmra.mxu0 %v349
  %v373 = vpop.f32.mrf.mxu0
  %v374 = vadd.f32 %v361, %v373
  %v375 = vpop.f32.mrf.mxu0
  %376 = vdwg.mxu0
  %v377 = vmax.f32 %v374, 0.0
  %v379 = vsel %vm200, %v334, 0
  %381 = vmatpush.bf16.msra.mxu0 %v177
  %382 = vmatpush.bf16.msra.mxu0 %v176
  %383 = vmatpush.bf16.msra.mxu0 %v175
  %384 = vmatpush.bf16.msra.mxu0 %v174
  %385 = vmatpush.bf16.msra.mxu0 %v173
  %386 = vmatpush.bf16.msra.mxu0 %v172
  %387 = vmatpush.bf16.msra.mxu0 %v171
  %388 = vmatpush.bf16.msra.mxu0 %v170
  %389 = vmatmul.bf16.gmra.mxu0 %v333
  %v390 = vpop.f32.mrf.mxu0
  %v391 = vadd.f32 %v108, %v390
  %v392 = vpop.f32.mrf.mxu0
  %393 = vdwg.mxu0
  %394 = vmatpush.bf16.msra.mxu0 0
  %395 = vmatpush.bf16.msra.mxu0 %v184
  %396 = vmatpush.bf16.msra.mxu0 %v183
  %397 = vmatpush.bf16.msra.mxu0 %v182
  %398 = vmatpush.bf16.msra.mxu0 %v181
  %399 = vmatpush.bf16.msra.mxu0 %v180
  %400 = vmatpush.bf16.msra.mxu0 %v179
  %401 = vmatpush.bf16.msra.mxu0 %v178
  %402 = vmatmul.bf16.gmra.mxu0 %v379
  %v403 = vpop.f32.mrf.mxu0
  %v404 = vadd.f32 %v391, %v403
  %v405 = vpop.f32.mrf.mxu0
  %406 = vdwg.mxu0
  %v407 = vmax.f32 %v404, 0.0
  %v408 = vld [vmem:[%s7] sm:$0x1]
  %v409 = vld [vmem:[%s5] sm:$0x1]
  %v410 = vpack.c.bf16 %v230, %v230
  %v411 = vld [vmem:[%s4] sm:$0xf]
  %v412 = vld [vmem:[%s4 + $0x4] sm:$0xf]
  %v413 = vld [vmem:[%s4 + $0x8] sm:$0xf]
  %v414 = vld [vmem:[%s4 + $0xc] sm:$0xf]
  %v415 = vld [vmem:[%s4 + $0x10] sm:$0xf]
  %v416 = vld [vmem:[%s4 + $0x14] sm:$0xf]
  %v423 = vunpack.c.l.b16 %v411
  %v424 = vunpack.c.l.b16 %v412
  %v425 = vunpack.c.l.b16 %v413
  %v426 = vunpack.c.l.b16 %v414
  %v427 = vunpack.c.l.b16 %v415
  %v428 = vunpack.c.l.b16 %v416
  %v429 = vpack.c.b16 %v424, %v423
  %v430 = vpack.c.b16 %v426, %v425
  %v431 = vpack.c.b16 %v428, %v427
  %vm435 = vcmask 392192
  %v437 = vsel %vm435, %v410, 0
  %439 = vmatpush.bf16.msra.mxu0 0
  %440 = vmatpush.bf16.msra.mxu0 0
  %441 = vmatpush.bf16.msra.mxu0 0
  %442 = vmatpush.bf16.msra.mxu0 0
  %443 = vmatpush.bf16.msra.mxu0 0
  %444 = vmatpush.bf16.msra.mxu0 %v431
  %445 = vmatpush.bf16.msra.mxu0 %v430
  %446 = vmatpush.bf16.msra.mxu0 %v429
  %447 = vmatmul.bf16.gmra.mxu0 %v437
  %v448 = vpop.f32.mrf.mxu0
  %v449 = vadd.f32 0.0, %v448
  %v450 = vpop.f32.mrf.mxu0
  %451 = vdwg.mxu0
  %v453 = vperm.slane %v409, 0
  %v455 = vadd.f32 %v453, %v449
  %v456 = vpack.c.bf16 %v279, %v279
  %v457 = vld [vmem:[%s4 + $0x18] sm:$0xf]
  %v458 = vld [vmem:[%s4 + $0x1c] sm:$0xf]
  %v459 = vld [vmem:[%s4 + $0x20] sm:$0xf]
  %v460 = vld [vmem:[%s4 + $0x24] sm:$0xf]
  %v461 = vld [vmem:[%s4 + $0x28] sm:$0xf]
  %v462 = vld [vmem:[%s4 + $0x2c] sm:$0xf]
  %v469 = vunpack.c.l.b16 %v457
  %v470 = vunpack.c.l.b16 %v458
  %v471 = vunpack.c.l.b16 %v459
  %v472 = vunpack.c.l.b16 %v460
  %v473 = vunpack.c.l.b16 %v461
  %v474 = vunpack.c.l.b16 %v462
  %v475 = vpack.c.b16 %v470, %v469
  %v476 = vpack.c.b16 %v472, %v471
  %v477 = vpack.c.b16 %v474, %v473
  %v482 = vsel %vm435, %v456, 0
  %484 = vmatpush.bf16.msra.mxu0 0
  %485 = vmatpush.bf16.msra.mxu0 0
  %486 = vmatpush.bf16.msra.mxu0 0
  %487 = vmatpush.bf16.msra.mxu0 0
  %488 = vmatpush.bf16.msra.mxu0 0
  %489 = vmatpush.bf16.msra.mxu0 %v477
  %490 = vmatpush.bf16.msra.mxu0 %v476
  %491 = vmatpush.bf16.msra.mxu0 %v475
  %492 = vmatmul.bf16.gmra.mxu0 %v482
  %v493 = vpop.f32.mrf.mxu0
  %v494 = vadd.f32 0.0, %v493
  %v495 = vpop.f32.mrf.mxu0
  %496 = vdwg.mxu0
  %v497 = vadd.f32 %v455, %v494
  %v498 = vpack.c.bf16 %v328, %v328
  %v499 = vld [vmem:[%s4 + $0x30] sm:$0xf]
  %v500 = vld [vmem:[%s4 + $0x34] sm:$0xf]
  %v501 = vld [vmem:[%s4 + $0x38] sm:$0xf]
  %v502 = vld [vmem:[%s4 + $0x3c] sm:$0xf]
  %v503 = vld [vmem:[%s4 + $0x40] sm:$0xf]
  %v504 = vld [vmem:[%s4 + $0x44] sm:$0xf]
  %v511 = vunpack.c.l.b16 %v499
  %v512 = vunpack.c.l.b16 %v500
  %v513 = vunpack.c.l.b16 %v501
  %v514 = vunpack.c.l.b16 %v502
  %v515 = vunpack.c.l.b16 %v503
  %v516 = vunpack.c.l.b16 %v504
  %v517 = vpack.c.b16 %v512, %v511
  %v518 = vpack.c.b16 %v514, %v513
  %v519 = vpack.c.b16 %v516, %v515
  %v524 = vsel %vm435, %v498, 0
  %526 = vmatpush.bf16.msra.mxu0 0
  %527 = vmatpush.bf16.msra.mxu0 0
  %528 = vmatpush.bf16.msra.mxu0 0
  %529 = vmatpush.bf16.msra.mxu0 0
  %530 = vmatpush.bf16.msra.mxu0 0
  %531 = vmatpush.bf16.msra.mxu0 %v519
  %532 = vmatpush.bf16.msra.mxu0 %v518
  %533 = vmatpush.bf16.msra.mxu0 %v517
  %534 = vmatmul.bf16.gmra.mxu0 %v524
  %v535 = vpop.f32.mrf.mxu0
  %v536 = vadd.f32 0.0, %v535
  %v537 = vpop.f32.mrf.mxu0
  %538 = vdwg.mxu0
  %v539 = vadd.f32 %v497, %v536
  %v540 = vmax.f32 %v539, 0.0
  %v541 = vpack.c.bf16 %v540, %v540
  %v542 = vld [vmem:[%s6] sm:$0xf]
  %v543 = vld [vmem:[%s6 + $0x4] sm:$0xf]
  %v544 = vld [vmem:[%s6 + $0x8] sm:$0xf]
  %v545 = vld [vmem:[%s6 + $0xc] sm:$0xf]
  %v550 = vunpack.c.l.b16 %v542
  %v551 = vunpack.c.l.b16 %v543
  %v552 = vunpack.c.l.b16 %v544
  %v553 = vunpack.c.l.b16 %v545
  %v554 = vpack.c.b16 %v551, %v550
  %v555 = vpack.c.b16 %v553, %v552
  %vm558 = vcmask 261120
  %v560 = vsel %vm558, %v541, 0
  %562 = vmatpush.bf16.msra.mxu0 0
  %563 = vmatpush.bf16.msra.mxu0 0
  %564 = vmatpush.bf16.msra.mxu0 0
  %565 = vmatpush.bf16.msra.mxu0 0
  %566 = vmatpush.bf16.msra.mxu0 0
  %567 = vmatpush.bf16.msra.mxu0 0
  %568 = vmatpush.bf16.msra.mxu0 %v555
  %569 = vmatpush.bf16.msra.mxu0 %v554
  %570 = vmatmul.bf16.gmra.mxu0 %v560
  %v571 = vpop.f32.mrf.mxu0
  %v572 = vadd.f32 0.0, %v571
  %v573 = vpop.f32.mrf.mxu0
  %574 = vdwg.mxu0
  %v576 = vperm.slane %v408, 0
  %v578 = vadd.f32 %v576, %v572
  %579 = vmatpush.bf16.msra.mxu0 0
  %580 = vmatpush.bf16.msra.mxu0 0
  %581 = vmatpush.bf16.msra.mxu0 0
  %582 = vmatpush.bf16.msra.mxu0 0
  %583 = vmatpush.bf16.msra.mxu0 0
  %584 = vmatpush.bf16.msra.mxu0 %v431
  %585 = vmatpush.bf16.msra.mxu0 %v430
  %586 = vmatpush.bf16.msra.mxu0 %v429
  %587 = vmatmul.bf16.gmra.mxu0 %v524
  %v588 = vpop.f32.mrf.mxu0
  %v589 = vadd.f32 0.0, %v588
  %v590 = vpop.f32.mrf.mxu0
  %591 = vdwg.mxu0
  %v592 = vadd.f32 %v453, %v589
  %v593 = vpack.c.bf16 %v377, %v377
  %v595 = vsel %vm435, %v593, 0
  %597 = vmatpush.bf16.msra.mxu0 0
  %598 = vmatpush.bf16.msra.mxu0 0
  %599 = vmatpush.bf16.msra.mxu0 0
  %600 = vmatpush.bf16.msra.mxu0 0
  %601 = vmatpush.bf16.msra.mxu0 0
  %602 = vmatpush.bf16.msra.mxu0 %v477
  %603 = vmatpush.bf16.msra.mxu0 %v476
  %604 = vmatpush.bf16.msra.mxu0 %v475
  %605 = vmatmul.bf16.gmra.mxu0 %v595
  %v606 = vpop.f32.mrf.mxu0
  %v607 = vadd.f32 0.0, %v606
  %v608 = vpop.f32.mrf.mxu0
  %609 = vdwg.mxu0
  %v610 = vadd.f32 %v592, %v607
  %v611 = vpack.c.bf16 %v407, %v407
  %v613 = vsel %vm435, %v611, 0
  %615 = vmatpush.bf16.msra.mxu0 0
  %616 = vmatpush.bf16.msra.mxu0 0
  %617 = vmatpush.bf16.msra.mxu0 0
  %618 = vmatpush.bf16.msra.mxu0 0
  %619 = vmatpush.bf16.msra.mxu0 0
  %620 = vmatpush.bf16.msra.mxu0 %v519
  %621 = vmatpush.bf16.msra.mxu0 %v518
  %622 = vmatpush.bf16.msra.mxu0 %v517
  %623 = vmatmul.bf16.gmra.mxu0 %v613
  %v624 = vpop.f32.mrf.mxu0
  %v625 = vadd.f32 0.0, %v624
  %v626 = vpop.f32.mrf.mxu0
  %627 = vdwg.mxu0
  %v628 = vadd.f32 %v610, %v625
  %v629 = vmax.f32 %v628, 0.0
  %v630 = vpack.c.bf16 %v629, %v629
  %v631 = vld [vmem:[%s6 + $0x10] sm:$0xf]
  %v632 = vld [vmem:[%s6 + $0x14] sm:$0xf]
  %v633 = vld [vmem:[%s6 + $0x18] sm:$0xf]
  %v634 = vld [vmem:[%s6 + $0x1c] sm:$0xf]
  %v639 = vunpack.c.l.b16 %v631
  %v640 = vunpack.c.l.b16 %v632
  %v641 = vunpack.c.l.b16 %v633
  %v642 = vunpack.c.l.b16 %v634
  %v643 = vpack.c.b16 %v640, %v639
  %v644 = vpack.c.b16 %v642, %v641
  %v648 = vsel %vm558, %v630, 0
  %650 = vmatpush.bf16.msra.mxu0 0
  %651 = vmatpush.bf16.msra.mxu0 0
  %652 = vmatpush.bf16.msra.mxu0 0
  %653 = vmatpush.bf16.msra.mxu0 0
  %654 = vmatpush.bf16.msra.mxu0 0
  %655 = vmatpush.bf16.msra.mxu0 0
  %656 = vmatpush.bf16.msra.mxu0 %v644
  %657 = vmatpush.bf16.msra.mxu0 %v643
  %658 = vmatmul.bf16.gmra.mxu0 %v648
  %v659 = vpop.f32.mrf.mxu0
  %v660 = vadd.f32 0.0, %v659
  %v661 = vpop.f32.mrf.mxu0
  %662 = vdwg.mxu0
  %v663 = vadd.f32 %v578, %v660
  %v664 = vmax.f32 %v663, 0.0
  %v665 = vld [vmem:[%s1] sm:$0xff]
  %v666 = vld [vmem:[%s8] sm:$0x1]
  %668 = vset.pattern.permute.xlu0 0
  %669 = vperm.xlu0 %668, %v665
  %v670 = vpop.permute.xlu0 %669
  %v673 = vperm.slane %v666, 0
  %v675 = vmul.f32 %v670, %v673
  %v676 = vld [vmem:[%s9] sm:$0x1]
  %v678 = vperm.slane %v676, 0
  %v680 = vadd.f32 %v675, %v678
  %v681 = vmax.f32 %v680, 0.0
  %v682 = vpack.c.bf16 %v681, %v681
  %v683 = vld [vmem:[%s10] sm:$0xf]
  %v684 = vld [vmem:[%s10 + $0x4] sm:$0xf]
  %v685 = vld [vmem:[%s11] sm:$0x1]
  %v687 = vperm.slane %v685, 0
  %v691 = vunpack.c.l.b16 %v683
  %v692 = vunpack.c.l.b16 %v684
  %v693 = vpack.c.b16 %v692, %v691
  %vm695 = vcmask 130048
  %v697 = vsel %vm695, %v682, 0
  %699 = vmatpush.bf16.msra.mxu0 0
  %700 = vmatpush.bf16.msra.mxu0 0
  %701 = vmatpush.bf16.msra.mxu0 0
  %702 = vmatpush.bf16.msra.mxu0 0
  %703 = vmatpush.bf16.msra.mxu0 0
  %704 = vmatpush.bf16.msra.mxu0 0
  %705 = vmatpush.bf16.msra.mxu0 0
  %706 = vmatpush.bf16.msra.mxu0 %v693
  %707 = vmatmul.bf16.gmra.mxu0 %v697
  %v708 = vpop.f32.mrf.mxu0
  %v709 = vadd.f32 %v687, %v708
  %v710 = vpop.f32.mrf.mxu0
  %711 = vdwg.mxu0
  %v712 = vmax.f32 %v709, 0.0
  %v713 = vpack.c.bf16 %v664, %v664
  %v714 = vld [vmem:[%s12] sm:$0xf]
  %v715 = vld [vmem:[%s12 + $0x4] sm:$0xf]
  %v716 = vld [vmem:[%s12 + $0x8] sm:$0xf]
  %v717 = vld [vmem:[%s12 + $0xc] sm:$0xf]
  %v718 = vpack.c.bf16 %v712, %v712
  %v719 = vld [vmem:[%s13] sm:$0xf]
  %v720 = vld [vmem:[%s13 + $0x4] sm:$0xf]
  %v723 = vunpack.c.l.b16 %v719
  %v724 = vunpack.c.l.b16 %v720
  %v725 = vpack.c.b16 %v724, %v723
  %v728 = vsel %vm695, %v718, 0
  %730 = vmatpush.bf16.msra.mxu0 0
  %731 = vmatpush.bf16.msra.mxu0 0
  %732 = vmatpush.bf16.msra.mxu0 0
  %733 = vmatpush.bf16.msra.mxu0 0
  %734 = vmatpush.bf16.msra.mxu0 0
  %735 = vmatpush.bf16.msra.mxu0 0
  %736 = vmatpush.bf16.msra.mxu0 0
  %737 = vmatpush.bf16.msra.mxu0 %v725
  %738 = vmatmul.bf16.gmra.mxu0 %v728
  %v739 = vpop.f32.mrf.mxu0
  %v740 = vadd.f32 0.0, %v739
  %v741 = vpop.f32.mrf.mxu0
  %742 = vdwg.mxu0
  %v747 = vunpack.c.l.b16 %v714
  %v748 = vunpack.c.l.b16 %v715
  %v749 = vunpack.c.l.b16 %v716
  %v750 = vunpack.c.l.b16 %v717
  %v751 = vpack.c.b16 %v748, %v747
  %v752 = vpack.c.b16 %v750, %v749
  %v756 = vsel %vm558, %v713, 0
  %758 = vmatpush.bf16.msra.mxu0 0
  %759 = vmatpush.bf16.msra.mxu0 0
  %760 = vmatpush.bf16.msra.mxu0 0
  %761 = vmatpush.bf16.msra.mxu0 0
  %762 = vmatpush.bf16.msra.mxu0 0
  %763 = vmatpush.bf16.msra.mxu0 0
  %764 = vmatpush.bf16.msra.mxu0 %v752
  %765 = vmatpush.bf16.msra.mxu0 %v751
  %766 = vmatmul.bf16.gmra.mxu0 %v756
  %v767 = vpop.f32.mrf.mxu0
  %v768 = vadd.f32 %v740, %v767
  %v769 = vpop.f32.mrf.mxu0
  %770 = vdwg.mxu0
  %v771 = vld [vmem:[%s14] sm:$0x1]
  %v773 = vperm.slane %v771, 0
  %v775 = vadd.f32 %v768, %v773
  %v776 = vmax.f32 %v775, 0.0
  %v777 = vpack.c.bf16 %v776, %v776
  %v778 = vld [vmem:[%s15] sm:$0xf]
  %v779 = vld [vmem:[%s15 + $0x4] sm:$0xf]
  %v780 = vld [vmem:[%s15 + $0x8] sm:$0xf]
  %v781 = vld [vmem:[%s15 + $0xc] sm:$0xf]
  %v782 = vld [vmem:[%s16] sm:$0xf]
  %v783 = vld [vmem:[%s16 + $0x4] sm:$0xf]
  %v784 = vld [vmem:[%s16 + $0x8] sm:$0xf]
  %v785 = vld [vmem:[%s16 + $0xc] sm:$0xf]
  %v790 = vunpack.c.l.b16 %v782
  %v791 = vunpack.c.l.b16 %v783
  %v792 = vunpack.c.l.b16 %v784
  %v793 = vunpack.c.l.b16 %v785
  %v794 = vpack.c.b16 %v791, %v790
  %v795 = vpack.c.b16 %v793, %v792
  %798 = vmatpush.bf16.msra.mxu0 0
  %799 = vmatpush.bf16.msra.mxu0 0
  %800 = vmatpush.bf16.msra.mxu0 0
  %801 = vmatpush.bf16.msra.mxu0 0
  %802 = vmatpush.bf16.msra.mxu0 0
  %803 = vmatpush.bf16.msra.mxu0 0
  %804 = vmatpush.bf16.msra.mxu0 %v795
  %805 = vmatpush.bf16.msra.mxu0 %v794
  %806 = vmatmul.bf16.gmra.mxu0 %v756
  %v807 = vpop.f32.mrf.mxu0
  %v808 = vadd.f32 0.0, %v807
  %v809 = vpop.f32.mrf.mxu0
  %810 = vdwg.mxu0
  %v815 = vunpack.c.l.b16 %v778
  %v816 = vunpack.c.l.b16 %v779
  %v817 = vunpack.c.l.b16 %v780
  %v818 = vunpack.c.l.b16 %v781
  %v819 = vpack.c.b16 %v816, %v815
  %v820 = vpack.c.b16 %v818, %v817
  %v824 = vsel %vm558, %v777, 0
  %826 = vmatpush.bf16.msra.mxu0 0
  %827 = vmatpush.bf16.msra.mxu0 0
  %828 = vmatpush.bf16.msra.mxu0 0
  %829 = vmatpush.bf16.msra.mxu0 0
  %830 = vmatpush.bf16.msra.mxu0 0
  %831 = vmatpush.bf16.msra.mxu0 0
  %832 = vmatpush.bf16.msra.mxu0 %v820
  %833 = vmatpush.bf16.msra.mxu0 %v819
  %834 = vmatmul.bf16.gmra.mxu0 %v824
  %v835 = vpop.f32.mrf.mxu0
  %v836 = vadd.f32 %v808, %v835
  %v837 = vpop.f32.mrf.mxu0
  %838 = vdwg.mxu0
  %v839 = vld [vmem:[%s17] sm:$0x1]
  %v841 = vperm.slane %v839, 0
  %v843 = vadd.f32 %v836, %v841
  %v844 = vmax.f32 %v843, 0.0
  %v845 = vpack.c.bf16 %v844, %v844
  %v846 = vld [vmem:[%s18] sm:$0xf]
  %v847 = vld [vmem:[%s18 + $0x4] sm:$0xf]
  %v848 = vld [vmem:[%s18 + $0x8] sm:$0xf]
  %v849 = vld [vmem:[%s18 + $0xc] sm:$0xf]
  %v850 = vld [vmem:[%s18 + $0x10] sm:$0xf]
  %v851 = vld [vmem:[%s18 + $0x14] sm:$0xf]
  %v852 = vld [vmem:[%s18 + $0x18] sm:$0xf]
  %v853 = vld [vmem:[%s18 + $0x1c] sm:$0xf]
  %v854 = vld [vmem:[%s18 + $0x20] sm:$0xf]
  %v855 = vld [vmem:[%s18 + $0x24] sm:$0xf]
  %v856 = vld [vmem:[%s19] sm:$0x1]
  %v858 = vperm.slane %v856, 0
  %v870 = vunpack.c.l.b16 %v846
  %v871 = vunpack.c.l.b16 %v847
  %v872 = vunpack.c.l.b16 %v848
  %v873 = vunpack.c.l.b16 %v849
  %v874 = vunpack.c.l.b16 %v850
  %v875 = vunpack.c.l.b16 %v851
  %v876 = vunpack.c.l.b16 %v852
  %v877 = vunpack.c.l.b16 %v853
  %v878 = vunpack.c.l.b16 %v854
  %v879 = vunpack.c.l.b16 %v855
  %v880 = vpack.c.b16 %v871, %v870
  %v881 = vpack.c.b16 %v873, %v872
  %v882 = vpack.c.b16 %v875, %v874
  %v883 = vpack.c.b16 %v877, %v876
  %v884 = vpack.c.b16 %v879, %v878
  %vm890 = vcmask 654336
  %v892 = vsel %vm890, %v845, 0
  %894 = vmatpush.bf16.msra.mxu0 0
  %895 = vmatpush.bf16.msra.mxu0 0
  %896 = vmatpush.bf16.msra.mxu0 0
  %897 = vmatpush.bf16.msra.mxu0 %v884
  %898 = vmatpush.bf16.msra.mxu0 %v883
  %899 = vmatpush.bf16.msra.mxu0 %v882
  %900 = vmatpush.bf16.msra.mxu0 %v881
  %901 = vmatpush.bf16.msra.mxu0 %v880
  %902 = vmatmul.bf16.gmra.mxu0 %v892
  %v903 = vpop.f32.mrf.mxu0
  %v904 = vadd.f32 %v858, %v903
  %v905 = vpop.f32.mrf.mxu0
  %906 = vdwg.mxu0
  %v907 = vmax.f32 %v904, 0.0
  %v908 = vpack.c.bf16 %v907, %v907
  %v909 = vld [vmem:[%s20] sm:$0xf]
  %v910 = vld [vmem:[%s20 + $0x4] sm:$0xf]
  %v911 = vld [vmem:[%s20 + $0x8] sm:$0xf]
  %v912 = vld [vmem:[%s20 + $0xc] sm:$0xf]
  %v913 = vld [vmem:[%s20 + $0x10] sm:$0xf]
  %v914 = vld [vmem:[%s20 + $0x14] sm:$0xf]
  %v915 = vld [vmem:[%s20 + $0x18] sm:$0xf]
  %v916 = vld [vmem:[%s20 + $0x1c] sm:$0xf]
  %v917 = vld [vmem:[%s20 + $0x20] sm:$0xf]
  %v918 = vld [vmem:[%s20 + $0x24] sm:$0xf]
  %v919 = vld [vmem:[%s21] sm:$0x1]
  %v921 = vperm.slane %v919, 0
  %v933 = vunpack.c.l.b16 %v909
  %v934 = vunpack.c.l.b16 %v910
  %v935 = vunpack.c.l.b16 %v911
  %v936 = vunpack.c.l.b16 %v912
  %v937 = vunpack.c.l.b16 %v913
  %v938 = vunpack.c.l.b16 %v914
  %v939 = vunpack.c.l.b16 %v915
  %v940 = vunpack.c.l.b16 %v916
  %v941 = vunpack.c.l.b16 %v917
  %v942 = vunpack.c.l.b16 %v918
  %v943 = vpack.c.b16 %v934, %v933
  %v944 = vpack.c.b16 %v936, %v935
  %v945 = vpack.c.b16 %v938, %v937
  %v946 = vpack.c.b16 %v940, %v939
  %v947 = vpack.c.b16 %v942, %v941
  %v954 = vsel %vm890, %v908, 0
  %956 = vmatpush.bf16.msra.mxu0 0
  %957 = vmatpush.bf16.msra.mxu0 0
  %958 = vmatpush.bf16.msra.mxu0 0
  %959 = vmatpush.bf16.msra.mxu0 %v947
  %960 = vmatpush.bf16.msra.mxu0 %v946
  %961 = vmatpush.bf16.msra.mxu0 %v945
  %962 = vmatpush.bf16.msra.mxu0 %v944
  %963 = vmatpush.bf16.msra.mxu0 %v943
  %964 = vmatmul.bf16.gmra.mxu0 %v954
  %v965 = vpop.f32.mrf.mxu0
  %v966 = vadd.f32 %v921, %v965
  %v967 = vpop.f32.mrf.mxu0
  %968 = vdwg.mxu0
  %969 = vst [vmem:[%s22] sm:$0xff] %v966
  // Predicated region
  $region90: #{_lambda_.1} parent=0 // pred_check
    _
  $region91: #{_lambda_.1} parent=0 // pred_check_branch
    %971 = sbr.rel (0) target = $region93
  $region92: #{_lambda_.1} parent=0 // pred_region
    _
  $region93: #{_lambda_.1} parent=0 // pred_fallthru
    _
  // Predicated region
  $region94: #{_lambda_.1} parent=0 // pred_check
    _
  $region95: #{_lambda_.1} parent=0 // pred_check_branch
    %973 = sbr.rel (0) target = $region97
  $region96: #{_lambda_.1} parent=0 // pred_region
    _
  $region97: #{_lambda_.1} parent=0 // pred_fallthru
    _

</llo_original>
